<compile_context>
chip_gen: v7x
topology: tpu7x:2x2x1
jax: 0.10.0
libtpu: 0.0.40
codegen_flags: <defaults>
</compile_context>

<pallas_src>
import functools

import jax
import jax.numpy as jnp
from jax.experimental import pallas as pl
from jax.experimental.pallas import tpu as pltpu

NEG_INFTY = -1.0e9
LN_EPS = 1e-6          # matches torch.nn.LayerNorm(d_model, eps=1e-06) in the module


def _layer_norm(x, w, b):
    mean = jnp.mean(x, axis=-1, keepdims=True)
    var = jnp.mean((x - mean) ** 2, axis=-1, keepdims=True)
    return (x - mean) * jax.lax.rsqrt(var + LN_EPS) * w + b


def _vmem_limit_bytes():
    """Generation-aware scoped-VMEM limit (default 16/32 MiB is far below physical)."""
    try:
        cap = int(pltpu.get_tpu_info().vmem_capacity_bytes)   # 128 MiB v5e/v6e, 64 MiB v7x
    except Exception:                                         # interpret mode / CPU fallback
        cap = 128 * 1024 * 1024
    return int(min((cap * 3) // 4, 100 * 1024 * 1024))


def _check_vmem_budget(S, D, F, n_heads, vmem_limit):
    """Guard for the weight-resident layout (see TODO(synk) above)."""
    weight_bytes = 2 * (3 * D * D + D * D + 2 * D * F)              # bf16, single-buffered
    act_bytes = 4 * (12 * S * D + 3 * S * F + 4 * n_heads * S * S)  # rough f32 working set
    io_bytes = 4 * (2 * 2 * S * D)                                  # double-buffered x/out blocks
    est = weight_bytes + act_bytes + io_bytes
    if est > 0.8 * vmem_limit:
        raise ValueError(
            f"decoder-layer working set ~{est / 2**20:.1f} MiB exceeds ~80% of the "
            f"{vmem_limit / 2**20:.0f} MiB VMEM limit; production sizes need flash-style "
            "kv tiling and a reduction-tiled FFN/projection (TODO(synk)).")


# ----------------------------- decoder layer kernel -----------------------------
def decoder_layer_kernel(x_ref, pos_ref,
                         ln1_w_ref, ln1_b_ref,
                         wqkv_ref, wc_ref,
                         f1_w_ref, f1_b_ref, f2_w_ref, f2_b_ref,
                         ln2_w_ref, ln2_b_ref,
                         out_ref, *, n_heads):
    x = x_ref[0]                       # (S, D) f32 — one batch row per grid step
    pos = pos_ref[...]                 # (S, D) f32 (pre-scaled by 1/sqrt(D))
    S, D = x.shape
    dh = D // n_heads

    x_embed = x + pos                                               # f32 (VPU)
    x_norm = _layer_norm(x_embed, ln1_w_ref[...], ln1_b_ref[...])   # f32
    xn16 = x_norm.astype(jnp.bfloat16)

    # ---- fused QKV projection: one bf16 MXU matmul, f32 accumulation ----
    # 1/sqrt(dh) is baked into the Q slice of wqkv at prep time.
    qkv = jnp.dot(xn16, wqkv_ref[...], preferred_element_type=jnp.float32)   # (S, 3D)
    q, k, v = qkv[:, :D], qkv[:, D:2 * D], qkv[:, 2 * D:]

    # split heads -> head-major (H, S, dh)
    qh = jnp.transpose(q.reshape(S, n_heads, dh), (1, 0, 2)).astype(jnp.bfloat16)
    kh = jnp.transpose(k.reshape(S, n_heads, dh), (1, 0, 2)).astype(jnp.bfloat16)
    vh = jnp.transpose(v.reshape(S, n_heads, dh), (1, 0, 2)).astype(jnp.bfloat16)
    # TODO(synk): fold combine_heads into the wc contraction (hqd,hde->qe) / use
    #             pltpu.einshape for the split once its Mosaic lowering is verified;
    #             for now one (S,D) relayout per layer remains.

    # causal mask built in-kernel (no SxS HBM input / DMA)
    row = jax.lax.broadcasted_iota(jnp.int32, (S, S), 0)
    col = jax.lax.broadcasted_iota(jnp.int32, (S, S), 1)
    causal = jnp.where(col > row, jnp.float32(NEG_INFTY), jnp.float32(0.0))

    logits = jnp.einsum("hqd,hkd->hqk", qh, kh,
                        preferred_element_type=jnp.float32) + causal[None]

    # softmax in f32 with an exact divide (approx reciprocal removed: it broke the
    # tight correctness check).
    m = jnp.max(logits, axis=-1, keepdims=True)
    e = jnp.exp(logits - m)
    w = e / jnp.sum(e, axis=-1, keepdims=True)
    # TODO(synk): flash-style kv tiling (online softmax state in VMEM scratch) is
    #             required at production S so the dense (H,S,S) tensor never exists.

    ctx = jnp.einsum("hqk,hkd->hqd", w.astype(jnp.bfloat16), vh,
                     preferred_element_type=jnp.float32)            # (H, S, dh)
    ctx = jnp.transpose(ctx, (1, 0, 2)).reshape(S, D)                # combine_heads
    attn = jnp.dot(ctx.astype(jnp.bfloat16), wc_ref[...],
                   preferred_element_type=jnp.float32)

    # ---- FFN (consumes x_norm, matching the module) + layernorm ----
    h1 = jnp.dot(xn16, f1_w_ref[...], preferred_element_type=jnp.float32)
    h1 = jnp.maximum(h1 + f1_b_ref[...], 0.0)
    ff = jnp.dot(h1.astype(jnp.bfloat16), f2_w_ref[...],
                 preferred_element_type=jnp.float32) + f2_b_ref[...]
    ff = _layer_norm(ff, ln2_w_ref[...], ln2_b_ref[...])

    out_ref[0] = x_embed + attn + ff


def decoder_layer(x, pos, lp, n_heads, vmem_limit):
    B, S, D = x.shape
    F = lp["f1_w"].shape[1]
    _check_vmem_budget(S, D, F, n_heads, vmem_limit)

    def inv(shape):
        zeros = (0,) * len(shape)
        # Grid-invariant block: constant index_map needs no prefetched "next" block,
        # so single-buffer it (halves resident weight VMEM — matters most on v7x).
        return pl.BlockSpec(shape, lambda b, _z=zeros: _z,
                            pipeline_mode=pl.Buffered(1))

    kernel = functools.partial(decoder_layer_kernel, n_heads=n_heads)
    # TODO(synk): for B==1 on v7x add a parallel head/S-tile grid axis so the second
    #             TensorCore gets work; TODO(synk): cross-call prefetch of the next
    #             layer's weights to hide the weight DMA at small batch.
    return pl.pallas_call(
        kernel,
        out_shape=jax.ShapeDtypeStruct((B, S, D), jnp.float32),
        grid=(B,),
        in_specs=[
            pl.BlockSpec((1, S, D), lambda b: (b, 0, 0)),     # x (one batch row)
            inv((S, D)),                                      # pos embedding
            inv((1, D)), inv((1, D)),                         # ln1 w, b
            inv((D, 3 * D)),                                  # fused wqkv (scale baked in)
            inv((D, D)),                                      # wc
            inv((D, F)), inv((1, F)),                         # ffwd_1 w, b
            inv((F, D)), inv((1, D)),                         # ffwd_2 w, b
            inv((1, D)), inv((1, D)),                         # ln2 w, b
        ],
        out_specs=pl.BlockSpec((1, S, D), lambda b: (b, 0, 0)),
        compiler_params=pltpu.CompilerParams(
            dimension_semantics=("parallel",),
            vmem_limit_bytes=vmem_limit),
    )(x, pos,
      lp["ln1_w"], lp["ln1_b"],
      lp["wqkv"], lp["wc"],
      lp["f1_w"], lp["f1_b"], lp["f2_w"], lp["f2_b"],
      lp["ln2_w"], lp["ln2_b"])


# ------------------------------ tied-logits kernel ------------------------------
def logits_kernel(x_ref, emb_ref, out_ref):
    # Contract over D against the (tv, D) embedding block — no transposed emb copy.
    out_ref[...] = jax.lax.dot_general(
        x_ref[...].astype(jnp.bfloat16), emb_ref[...],
        dimension_numbers=(((1,), (1,)), ((), ())),
        preferred_element_type=jnp.float32)                  # (tr, tv) f32


def tied_logits(x, emb16, vmem_limit, *, tr=None, tv=None):
    B, S, D = x.shape
    V = emb16.shape[0]
    R = B * S
    x2d = x.reshape(R, D)                                    # collapse (B,S) -> rows (fills MXU M)
    if tr is None:
        tr = R if R <= 256 else 256
    if tv is None:
        tv = V if V <= 1024 else 1024                        # lane-dense vocab tile
    # vocab outer, rows inner: the (tv, D) embedding tile stays resident across the
    # inner row axis (fetched ~once), the small x tile is the re-fetched operand.
    grid = (pl.cdiv(V, tv), pl.cdiv(R, tr))
    out = pl.pallas_call(
        logits_kernel,
        out_shape=jax.ShapeDtypeStruct((R, V), jnp.float32),
        grid=grid,
        in_specs=[pl.BlockSpec((tr, D), lambda v, r: (r, 0)),
                  pl.BlockSpec((tv, D), lambda v, r: (v, 0))],
        out_specs=pl.BlockSpec((tr, tv), lambda v, r: (r, v)),
        compiler_params=pltpu.CompilerParams(
            dimension_semantics=("parallel", "parallel"),
            vmem_limit_bytes=vmem_limit),
    )(x2d, emb16)
    return out.reshape(B, S, V)


# -------------------------- one-time parameter preparation --------------------------
def prepare_params(params, n_heads):
    """Pre-cast weights to bf16 ONCE, fuse QKV, bake 1/sqrt(dh) into wq, pre-scale pos."""
    emb = params["dec_embed"]
    D = emb.shape[1]
    dh = D // n_heads
    d_rsqrt = jax.lax.rsqrt(jnp.float32(D))
    bf16 = jnp.bfloat16
    prep = {
        "dec_embed": emb,                       # f32, for the token gather + residual path
        "dec_embed_bf16": emb.astype(bf16),     # tied-logits weight (cast once, not per call)
        "layers": [],
    }
    for lp in params["layers"]:
        wq_scaled = lp["wq"] * jax.lax.rsqrt(jnp.float32(dh))        # bake attention scale
        wqkv = jnp.concatenate([wq_scaled, lp["wk"], lp["wv"]], axis=1).astype(bf16)
        prep["layers"].append({
            "pos_embed": lp["pos_embed"] * d_rsqrt,                  # pre-scaled, f32
            "wqkv": wqkv,
            "wc": lp["wc"].astype(bf16),
            "f1_w": lp["f1_w"].astype(bf16), "f1_b": lp["f1_b"],
            "f2_w": lp["f2_w"].astype(bf16), "f2_b": lp["f2_b"],
            "ln1_w": lp["ln1_w"], "ln1_b": lp["ln1_b"],
            "ln2_w": lp["ln2_w"], "ln2_b": lp["ln2_b"],
        })
    return prep


# --------------------------------- full forward ---------------------------------
def gpt_decoder_forward(tokens, prep, n_heads):
    """Forward of GPTDecoder (== Decoder.forward), training=False."""
    emb = prep["dec_embed"]                    # (V, D) f32
    B, S = tokens.shape
    D = emb.shape[1]
    d_rsqrt = jax.lax.rsqrt(jnp.float32(D))
    vmem_limit = _vmem_limit_bytes()

    x = emb[tokens] * d_rsqrt                  # glue: embedding gather + scale
    for lp in prep["layers"]:
        pos = lp["pos_embed"][:S]              # (S, D), already scaled
        x = decoder_layer(x, pos, lp, n_heads, vmem_limit)

    logits = tied_logits(x, prep["dec_embed_bf16"], vmem_limit)   # tied embedding
    return x, logits


# ---------------- pure-JAX references (for correctness checks) ----------------
def reference_forward_mimic(tokens, prep, n_heads):
    """Mirrors the kernel's exact bf16-operand / f32-accum rounding choices."""
    emb = prep["dec_embed"]
    B, S = tokens.shape
    D = emb.shape[1]
    dh = D // n_heads
    d_rsqrt = jax.lax.rsqrt(jnp.float32(D))
    x = emb[tokens] * d_rsqrt
    row = jax.lax.broadcasted_iota(jnp.int32, (S, S), 0)
    col = jax.lax.broadcasted_iota(jnp.int32, (S, S), 1)
    causal = jnp.where(col > row, jnp.float32(NEG_INFTY), jnp.float32(0.0))
    bf16 = jnp.bfloat16
    for lp in prep["layers"]:
        pos = lp["pos_embed"][:S]
        x_embed = x + pos[None]
        xn = _layer_norm(x_embed, lp["ln1_w"], lp["ln1_b"])
        xn16 = xn.astype(bf16)
        qkv = jnp.dot(xn16, lp["wqkv"], preferred_element_type=jnp.float32)
        q, k, v = qkv[..., :D], qkv[..., D:2 * D], qkv[..., 2 * D:]
        qh = q.reshape(B, S, n_heads, dh).transpose(0, 2, 1, 3).astype(bf16)
        kh = k.reshape(B, S, n_heads, dh).transpose(0, 2, 1, 3).astype(bf16)
        vh = v.reshape(B, S, n_heads, dh).transpose(0, 2, 1, 3).astype(bf16)
        logits = jnp.einsum("bhqd,bhkd->bhqk", qh, kh,
                            preferred_element_type=jnp.float32) + causal[None, None]
        m = jnp.max(logits, axis=-1, keepdims=True)
        e = jnp.exp(logits - m)
        w = e / jnp.sum(e, axis=-1, keepdims=True)
        ctx = jnp.einsum("bhqk,bhkd->bhqd", w.astype(bf16), vh,
                         preferred_element_type=jnp.float32)
        ctx = ctx.transpose(0, 2, 1, 3).reshape(B, S, D)
        attn = jnp.dot(ctx.astype(bf16), lp["wc"], preferred_element_type=jnp.float32)
        h1 = jnp.dot(xn16, lp["f1_w"], preferred_element_type=jnp.float32)
        h1 = jnp.maximum(h1 + lp["f1_b"], 0.0)
        ff = jnp.dot(h1.astype(bf16), lp["f2_w"],
                     preferred_element_type=jnp.float32) + lp["f2_b"]
        ff = _layer_norm(ff, lp["ln2_w"], lp["ln2_b"])
        x = x_embed + attn + ff
    logits_out = jax.lax.dot_general(
        x.astype(bf16), prep["dec_embed_bf16"],
        dimension_numbers=(((2,), (1,)), ((), ())),
        preferred_element_type=jnp.float32)
    return x, logits_out


def reference_forward_module(tokens, params, n_heads):
    """Full-f32 module semantics (PyTorch GPTDecoder, training=False)."""
    hp = jax.lax.Precision.HIGHEST
    emb = params["dec_embed"]
    B, S = tokens.shape
    D = emb.shape[1]
    dh = D // n_heads
    d_rsqrt = jax.lax.rsqrt(jnp.float32(D))
    x = emb[tokens] * d_rsqrt
    mask = jnp.triu(jnp.ones((S, S), jnp.float32), k=1) * NEG_INFTY
    for lp in params["layers"]:
        pos = lp["pos_embed"][:S] * d_rsqrt
        x_embed = x + pos[None]
        xn = _layer_norm(x_embed, lp["ln1_w"], lp["ln1_b"])
        q = jnp.dot(xn, lp["wq"], precision=hp).reshape(B, S, n_heads, dh).transpose(0, 2, 1, 3)
        k = jnp.dot(xn, lp["wk"], precision=hp).reshape(B, S, n_heads, dh).transpose(0, 2, 1, 3)
        v = jnp.dot(xn, lp["wv"], precision=hp).reshape(B, S, n_heads, dh).transpose(0, 2, 1, 3)
        logits = jnp.einsum("bhqd,bhkd->bhqk", q, k, precision=hp)
        logits = logits * jax.lax.rsqrt(jnp.float32(dh)) + mask[None, None]
        w = jax.nn.softmax(logits, axis=-1)
        a = jnp.einsum("bhqk,bhkd->bhqd", w, v, precision=hp)
        a = a.transpose(0, 2, 1, 3).reshape(B, S, D)
        a = jnp.dot(a, lp["wc"], precision=hp)
        h1 = jnp.maximum(jnp.dot(xn, lp["f1_w"], precision=hp) + lp["f1_b"], 0.0)
        ff = _layer_norm(jnp.dot(h1, lp["f2_w"], precision=hp) + lp["f2_b"],
                         lp["ln2_w"], lp["ln2_b"])
        x = x_embed + a + ff
    return x, jnp.dot(x, emb.T, precision=hp)


def init_params(key, n_layers, d_model, d_ffwd, vocab_size, max_seq_len):
    keys = jax.random.split(key, 2 + n_layers)
    params = {
        "dec_embed": 0.02 * jax.random.normal(keys[0], (vocab_size, d_model), jnp.float32),
        "layers": [],
    }
    for m in range(n_layers):
        k = jax.random.split(keys[2 + m], 8)
        s = 0.05
        params["layers"].append({
            "pos_embed": 0.02 * jax.random.normal(k[0], (max_seq_len, d_model), jnp.float32),
            "wq": s * jax.random.normal(k[1], (d_model, d_model), jnp.float32),
            "wk": s * jax.random.normal(k[2], (d_model, d_model), jnp.float32),
            "wv": s * jax.random.normal(k[3], (d_model, d_model), jnp.float32),
            "wc": s * jax.random.normal(k[4], (d_model, d_model), jnp.float32),
            "f1_w": s * jax.random.normal(k[5], (d_model, d_ffwd), jnp.float32),
            "f1_b": 0.01 * jax.random.normal(k[6], (1, d_ffwd), jnp.float32),
            "f2_w": s * jax.random.normal(k[7], (d_ffwd, d_model), jnp.float32),
            "f2_b": jnp.zeros((1, d_model), jnp.float32),
            "ln1_w": jnp.ones((1, d_model), jnp.float32),
            "ln1_b": jnp.zeros((1, d_model), jnp.float32),
            "ln2_w": jnp.ones((1, d_model), jnp.float32),
            "ln2_b": jnp.zeros((1, d_model), jnp.float32),
        })
    return params


if __name__ == "__main__":
    # Small shapes consistent with the module.
    n_layers, n_heads, d_model, d_ffwd = 2, 4, 32, 64
    vocab_size, max_seq_len = 32, 8
    batch, seq = 2, 8

    key = jax.random.PRNGKey(0)
    pkey, tkey = jax.random.split(key)
    params = init_params(pkey, n_layers, d_model, d_ffwd, vocab_size, max_seq_len)
    tokens = jax.random.randint(tkey, (batch, seq), 0, vocab_size, dtype=jnp.int32)

    # One-time weight prep (bf16 cast, QKV fuse, scale bake) — NOT done per forward.
    prep = prepare_params(params, n_heads)

    fwd = jax.jit(functools.partial(gpt_decoder_forward, n_heads=n_heads))
    layer_out, dec_logits = fwd(tokens, prep)
    layer_out = jax.block_until_ready(layer_out)
    dec_logits = jax.block_until_ready(dec_logits)

    assert layer_out.shape == (batch, seq, d_model)
    assert dec_logits.shape == (batch, seq, vocab_size)

    # Check 1: reference that mirrors the kernel's bf16-operand / f32-accum rounding.
    m_out, m_logits = reference_forward_mimic(tokens, prep, n_heads)
    assert jnp.allclose(layer_out, m_out, atol=1e-2, rtol=1e-2), \
        float(jnp.max(jnp.abs(layer_out - m_out)))
    assert jnp.allclose(dec_logits, m_logits, atol=1e-2, rtol=1e-2), \
        float(jnp.max(jnp.abs(dec_logits - m_logits)))

    # Check 2: full-f32 module semantics (loose: bf16 MXU rounding only).
    f_out, f_logits = reference_forward_module(tokens, params, n_heads)
    assert jnp.allclose(layer_out, f_out, atol=5e-2, rtol=5e-2), \
        float(jnp.max(jnp.abs(layer_out - f_out)))
    assert jnp.allclose(dec_logits, f_logits, atol=5e-2, rtol=5e-2), \
        float(jnp.max(jnp.abs(dec_logits - f_logits)))

    print("KERNEL_OK")
</pallas_src>

<mosaic_0001>
module attributes {stable_mosaic.version = 11 : i64} {
  func.func @logits_kernel(%arg0: i32, %arg1: i32, %arg2: memref<16x32xf32, #tpu.memory_space<vmem>>, %arg3: memref<32x32xbf16, #tpu.memory_space<vmem>>, %arg4: memref<16x32xf32, #tpu.memory_space<vmem>>) attributes {dimension_semantics = [#tpu.dimension_semantics<parallel>, #tpu.dimension_semantics<parallel>], iteration_bounds = array<i64: 1, 1>, scalar_prefetch = 0 : i64, scratch_operands = 0 : i64, tpu.core_type = #tpu.core_type<tc>, window_params = [{transform_indices = @transform_0, window_bounds = array<i64: 16, 32>}, {transform_indices = @transform_1, window_bounds = array<i64: 32, 32>}, {transform_indices = @transform_2, window_bounds = array<i64: 16, 32>}]} {
    %c0 = arith.constant 0 : index
    %c0_0 = arith.constant 0 : index
    %0 = vector.load %arg2[%c0, %c0_0] : memref<16x32xf32, #tpu.memory_space<vmem>>, vector<16x32xf32>
    %1 = arith.truncf %0 : vector<16x32xf32> to vector<16x32xbf16>
    %c0_1 = arith.constant 0 : index
    %c0_2 = arith.constant 0 : index
    %2 = vector.load %arg3[%c0_1, %c0_2] : memref<32x32xbf16, #tpu.memory_space<vmem>>, vector<32x32xbf16>
    %cst = arith.constant dense<0.000000e+00> : vector<16x32xf32>
    %3 = tpu.matmul %1, %2, %cst {dimension_numbers = #tpu.dot_dimension_numbers<[1], [1], [0], [0], [0, 0, 1, 0], [], []>} : vector<16x32xbf16>, vector<32x32xbf16>, vector<16x32xf32> -> vector<16x32xf32>
    %c0_3 = arith.constant 0 : index
    %c0_4 = arith.constant 0 : index
    %4 = vector.load %arg4[%c0_3, %c0_4] : memref<16x32xf32, #tpu.memory_space<vmem>>, vector<16x32xf32>
    tpu.vector_store %arg4[%c0_3, %c0_4], %3 {strides = array<i32>} : memref<16x32xf32, #tpu.memory_space<vmem>>, vector<16x32xf32>,
    return
  }
  func.func @transform_0(%arg0: i32, %arg1: i32) -> (i32, i32) {
    %c0_i32 = arith.constant 0 : i32
    %c0_i32_0 = arith.constant 0 : i32
    return %arg1, %c0_i32 : i32, i32
  }
  func.func @transform_1(%arg0: i32, %arg1: i32) -> (i32, i32) {
    %c0_i32 = arith.constant 0 : i32
    %c0_i32_0 = arith.constant 0 : i32
    return %arg0, %c0_i32 : i32, i32
  }
  func.func @transform_2(%arg0: i32, %arg1: i32) -> (i32, i32) {
    %c0_i32 = arith.constant 0 : i32
    return %arg1, %arg0 : i32, i32
  }
}

module attributes {stable_mosaic.version = 11 : i64} {
  func.func @decoder_layer_kernel(%arg0: i32, %arg1: memref<1x8x32xf32, #tpu.memory_space<vmem>>, %arg2: memref<8x32xf32, #tpu.memory_space<vmem>>, %arg3: memref<1x32xf32, #tpu.memory_space<vmem>>, %arg4: memref<1x32xf32, #tpu.memory_space<vmem>>, %arg5: memref<32x96xbf16, #tpu.memory_space<vmem>>, %arg6: memref<32x32xbf16, #tpu.memory_space<vmem>>, %arg7: memref<32x64xbf16, #tpu.memory_space<vmem>>, %arg8: memref<1x64xf32, #tpu.memory_space<vmem>>, %arg9: memref<64x32xbf16, #tpu.memory_space<vmem>>, %arg10: memref<1x32xf32, #tpu.memory_space<vmem>>, %arg11: memref<1x32xf32, #tpu.memory_space<vmem>>, %arg12: memref<1x32xf32, #tpu.memory_space<vmem>>, %arg13: memref<1x8x32xf32, #tpu.memory_space<vmem>>) attributes {dimension_semantics = [#tpu.dimension_semantics<parallel>], iteration_bounds = array<i64: 2>, scalar_prefetch = 0 : i64, scratch_operands = 0 : i64, tpu.core_type = #tpu.core_type<tc>, window_params = [{transform_indices = @transform_0, window_bounds = array<i64: 1, 8, 32>}, {pipeline_mode = #tpu.pipeline_mode<synchronous>, transform_indices = @transform_1, window_bounds = array<i64: 8, 32>}, {pipeline_mode = #tpu.pipeline_mode<synchronous>, transform_indices = @transform_2, window_bounds = array<i64: 1, 32>}, {pipeline_mode = #tpu.pipeline_mode<synchronous>, transform_indices = @transform_3, window_bounds = array<i64: 1, 32>}, {pipeline_mode = #tpu.pipeline_mode<synchronous>, transform_indices = @transform_4, window_bounds = array<i64: 32, 96>}, {pipeline_mode = #tpu.pipeline_mode<synchronous>, transform_indices = @transform_5, window_bounds = array<i64: 32, 32>}, {pipeline_mode = #tpu.pipeline_mode<synchronous>, transform_indices = @transform_6, window_bounds = array<i64: 32, 64>}, {pipeline_mode = #tpu.pipeline_mode<synchronous>, transform_indices = @transform_7, window_bounds = array<i64: 1, 64>}, {pipeline_mode = #tpu.pipeline_mode<synchronous>, transform_indices = @transform_8, window_bounds = array<i64: 64, 32>}, {pipeline_mode = #tpu.pipeline_mode<synchronous>, transform_indices = @transform_9, window_bounds = array<i64: 1, 32>}, {pipeline_mode = #tpu.pipeline_mode<synchronous>, transform_indices = @transform_10, window_bounds = array<i64: 1, 32>}, {pipeline_mode = #tpu.pipeline_mode<synchronous>, transform_indices = @transform_11, window_bounds = array<i64: 1, 32>}, {transform_indices = @transform_12, window_bounds = array<i64: 1, 8, 32>}]} {
    %c0 = arith.constant 0 : index
    %c0_0 = arith.constant 0 : index
    %c0_1 = arith.constant 0 : index
    %0 = vector.load %arg1[%c0, %c0_0, %c0_1] : memref<1x8x32xf32, #tpu.memory_space<vmem>>, vector<1x8x32xf32>
    %1 = vector.shape_cast %0 : vector<1x8x32xf32> to vector<8x32xf32>
    %c0_2 = arith.constant 0 : index
    %c0_3 = arith.constant 0 : index
    %2 = vector.load %arg2[%c0_2, %c0_3] : memref<8x32xf32, #tpu.memory_space<vmem>>, vector<8x32xf32>
    %3 = arith.addf %1, %2 : vector<8x32xf32>
    %c0_4 = arith.constant 0 : index
    %c0_5 = arith.constant 0 : index
    %4 = vector.load %arg3[%c0_4, %c0_5] : memref<1x32xf32, #tpu.memory_space<vmem>>, vector<1x32xf32>
    %c0_6 = arith.constant 0 : index
    %c0_7 = arith.constant 0 : index
    %5 = vector.load %arg4[%c0_6, %c0_7] : memref<1x32xf32, #tpu.memory_space<vmem>>, vector<1x32xf32>
    %cst = arith.constant dense<0.000000e+00> : vector<8xf32>
    %6 = vector.multi_reduction <add>, %3, %cst [1] : vector<8x32xf32> to vector<8xf32>
    %7 = vector.shape_cast %6 : vector<8xf32> to vector<8x1xf32>
    %cst_8 = arith.constant 3.200000e+01 : f32
    %8 = vector.broadcast %cst_8 : f32 to vector<8x1xf32>
    %9 = arith.divf %7, %8 : vector<8x1xf32>
    %10 = vector.broadcast %9 : vector<8x1xf32> to vector<8x32xf32>
    %11 = arith.subf %3, %10 : vector<8x32xf32>
    %12 = arith.mulf %11, %11 : vector<8x32xf32>
    %cst_9 = arith.constant dense<0.000000e+00> : vector<8xf32>
    %13 = vector.multi_reduction <add>, %12, %cst_9 [1] : vector<8x32xf32> to vector<8xf32>
    %14 = vector.shape_cast %13 : vector<8xf32> to vector<8x1xf32>
    %cst_10 = arith.constant 3.200000e+01 : f32
    %15 = vector.broadcast %cst_10 : f32 to vector<8x1xf32>
    %16 = arith.divf %14, %15 : vector<8x1xf32>
    %17 = vector.broadcast %9 : vector<8x1xf32> to vector<8x32xf32>
    %18 = arith.subf %3, %17 : vector<8x32xf32>
    %cst_11 = arith.constant 9.99999997E-7 : f32
    %19 = vector.broadcast %cst_11 : f32 to vector<8x1xf32>
    %20 = arith.addf %16, %19 : vector<8x1xf32>
    %21 = math.rsqrt %20 : vector<8x1xf32>
    %22 = vector.broadcast %21 : vector<8x1xf32> to vector<8x32xf32>
    %23 = arith.mulf %18, %22 : vector<8x32xf32>
    %24 = vector.broadcast %4 : vector<1x32xf32> to vector<8x32xf32>
    %25 = arith.mulf %23, %24 : vector<8x32xf32>
    %26 = vector.broadcast %5 : vector<1x32xf32> to vector<8x32xf32>
    %27 = arith.addf %25, %26 : vector<8x32xf32>
    %28 = arith.truncf %27 : vector<8x32xf32> to vector<8x32xbf16>
    %c0_12 = arith.constant 0 : index
    %c0_13 = arith.constant 0 : index
    %29 = vector.load %arg5[%c0_12, %c0_13] : memref<32x96xbf16, #tpu.memory_space<vmem>>, vector<32x96xbf16>
    %cst_14 = arith.constant dense<0.000000e+00> : vector<8x96xf32>
    %30 = tpu.matmul %28, %29, %cst_14 {dimension_numbers = #tpu.dot_dimension_numbers<[1], [0], [0], [1], [0, 0, 1, 1], [], []>} : vector<8x32xbf16>, vector<32x96xbf16>, vector<8x96xf32> -> vector<8x96xf32>
    %31 = vector.extract_strided_slice %30 {offsets = [0, 0], sizes = [8, 32], strides = [1, 1]} : vector<8x96xf32> to vector<8x32xf32>
    %32 = vector.extract_strided_slice %30 {offsets = [0, 32], sizes = [8, 32], strides = [1, 1]} : vector<8x96xf32> to vector<8x32xf32>
    %33 = vector.extract_strided_slice %30 {offsets = [0, 64], sizes = [8, 32], strides = [1, 1]} : vector<8x96xf32> to vector<8x32xf32>
    %34 = vector.shape_cast %31 : vector<8x32xf32> to vector<8x4x8xf32>
    %35 = tpu.transpose %34, [1, 0, 2] : vector<8x4x8xf32> -> vector<4x8x8xf32>
    %36 = arith.truncf %35 : vector<4x8x8xf32> to vector<4x8x8xbf16>
    %37 = vector.shape_cast %32 : vector<8x32xf32> to vector<8x4x8xf32>
    %38 = tpu.transpose %37, [1, 0, 2] : vector<8x4x8xf32> -> vector<4x8x8xf32>
    %39 = arith.truncf %38 : vector<4x8x8xf32> to vector<4x8x8xbf16>
    %40 = vector.shape_cast %33 : vector<8x32xf32> to vector<8x4x8xf32>
    %41 = tpu.transpose %40, [1, 0, 2] : vector<8x4x8xf32> -> vector<4x8x8xf32>
    %42 = arith.truncf %41 : vector<4x8x8xf32> to vector<4x8x8xbf16>
    %43 = tpu.iota {dimensions = array<i32: 0>} : vector<8x8xi32>
    %44 = tpu.iota {dimensions = array<i32: 1>} : vector<8x8xi32>
    %45 = arith.cmpi sgt, %44, %43 : vector<8x8xi32>
    %cst_15 = arith.constant -1.000000e+09 : f32
    %cst_16 = arith.constant 0.000000e+00 : f32
    %46 = vector.broadcast %cst_15 : f32 to vector<8x8xf32>
    %47 = vector.broadcast %cst_16 : f32 to vector<8x8xf32>
    %48 = arith.select %45, %46, %47 : vector<8x8xi1>, vector<8x8xf32>
    "tpu.trace_start"() <{level = 10 : i32, message = "hqd,hkd->hqk"}> : () -> ()
    %cst_17 = arith.constant dense<0.000000e+00> : vector<4x8x8xf32>
    %49 = tpu.matmul %36, %39, %cst_17 {dimension_numbers = #tpu.dot_dimension_numbers<[2], [2], [1], [1], [0, 0, 0, 1, 1, 1], [0], [0]>} : vector<4x8x8xbf16>, vector<4x8x8xbf16>, vector<4x8x8xf32> -> vector<4x8x8xf32>
    "tpu.trace_stop"() : () -> ()
    %50 = vector.shape_cast %48 : vector<8x8xf32> to vector<1x8x8xf32>
    %51 = vector.broadcast %50 : vector<1x8x8xf32> to vector<4x8x8xf32>
    %52 = arith.addf %49, %51 : vector<4x8x8xf32>
    %cst_18 = arith.constant dense<0xFF800000> : vector<4x8xf32>
    %53 = vector.multi_reduction <maximumf>, %52, %cst_18 [2] : vector<4x8x8xf32> to vector<4x8xf32>
    %54 = vector.shape_cast %53 : vector<4x8xf32> to vector<4x8x1xf32>
    %55 = vector.broadcast %54 : vector<4x8x1xf32> to vector<4x8x8xf32>
    %56 = arith.subf %52, %55 : vector<4x8x8xf32>
    %57 = math.exp %56 : vector<4x8x8xf32>
    %cst_19 = arith.constant dense<0.000000e+00> : vector<4x8xf32>
    %58 = vector.multi_reduction <add>, %57, %cst_19 [2] : vector<4x8x8xf32> to vector<4x8xf32>
    %59 = vector.shape_cast %58 : vector<4x8xf32> to vector<4x8x1xf32>
    %60 = vector.broadcast %59 : vector<4x8x1xf32> to vector<4x8x8xf32>
    %61 = arith.divf %57, %60 : vector<4x8x8xf32>
    %62 = arith.truncf %61 : vector<4x8x8xf32> to vector<4x8x8xbf16>
    "tpu.trace_start"() <{level = 10 : i32, message = "hqk,hkd->hqd"}> : () -> ()
    %cst_20 = arith.constant dense<0.000000e+00> : vector<4x8x8xf32>
    %63 = tpu.matmul %62, %42, %cst_20 {dimension_numbers = #tpu.dot_dimension_numbers<[2], [1], [1], [2], [0, 0, 0, 1, 1, 2], [0], [0]>} : vector<4x8x8xbf16>, vector<4x8x8xbf16>, vector<4x8x8xf32> -> vector<4x8x8xf32>
    "tpu.trace_stop"() : () -> ()
    %64 = tpu.transpose %63, [1, 0, 2] : vector<4x8x8xf32> -> vector<8x4x8xf32>
    %65 = vector.shape_cast %64 : vector<8x4x8xf32> to vector<8x32xf32>
    %66 = arith.truncf %65 : vector<8x32xf32> to vector<8x32xbf16>
    %c0_21 = arith.constant 0 : index
    %c0_22 = arith.constant 0 : index
    %67 = vector.load %arg6[%c0_21, %c0_22] : memref<32x32xbf16, #tpu.memory_space<vmem>>, vector<32x32xbf16>
    %cst_23 = arith.constant dense<0.000000e+00> : vector<8x32xf32>
    %68 = tpu.matmul %66, %67, %cst_23 {dimension_numbers = #tpu.dot_dimension_numbers<[1], [0], [0], [1], [0, 0, 1, 1], [], []>} : vector<8x32xbf16>, vector<32x32xbf16>, vector<8x32xf32> -> vector<8x32xf32>
    %c0_24 = arith.constant 0 : index
    %c0_25 = arith.constant 0 : index
    %69 = vector.load %arg7[%c0_24, %c0_25] : memref<32x64xbf16, #tpu.memory_space<vmem>>, vector<32x64xbf16>
    %cst_26 = arith.constant dense<0.000000e+00> : vector<8x64xf32>
    %70 = tpu.matmul %28, %69, %cst_26 {dimension_numbers = #tpu.dot_dimension_numbers<[1], [0], [0], [1], [0, 0, 1, 1], [], []>} : vector<8x32xbf16>, vector<32x64xbf16>, vector<8x64xf32> -> vector<8x64xf32>
    %c0_27 = arith.constant 0 : index
    %c0_28 = arith.constant 0 : index
    %71 = vector.load %arg8[%c0_27, %c0_28] : memref<1x64xf32, #tpu.memory_space<vmem>>, vector<1x64xf32>
    %72 = vector.broadcast %71 : vector<1x64xf32> to vector<8x64xf32>
    %73 = arith.addf %70, %72 : vector<8x64xf32>
    %cst_29 = arith.constant 0.000000e+00 : f32
    %74 = vector.broadcast %cst_29 : f32 to vector<8x64xf32>
    %75 = arith.maximumf %73, %74 : vector<8x64xf32>
    %76 = arith.truncf %75 : vector<8x64xf32> to vector<8x64xbf16>
    %c0_30 = arith.constant 0 : index
    %c0_31 = arith.constant 0 : index
    %77 = vector.load %arg9[%c0_30, %c0_31] : memref<64x32xbf16, #tpu.memory_space<vmem>>, vector<64x32xbf16>
    %cst_32 = arith.constant dense<0.000000e+00> : vector<8x32xf32>
    %78 = tpu.matmul %76, %77, %cst_32 {dimension_numbers = #tpu.dot_dimension_numbers<[1], [0], [0], [1], [0, 0, 1, 1], [], []>} : vector<8x64xbf16>, vector<64x32xbf16>, vector<8x32xf32> -> vector<8x32xf32>
    %c0_33 = arith.constant 0 : index
    %c0_34 = arith.constant 0 : index
    %79 = vector.load %arg10[%c0_33, %c0_34] : memref<1x32xf32, #tpu.memory_space<vmem>>, vector<1x32xf32>
    %80 = vector.broadcast %79 : vector<1x32xf32> to vector<8x32xf32>
    %81 = arith.addf %78, %80 : vector<8x32xf32>
    %c0_35 = arith.constant 0 : index
    %c0_36 = arith.constant 0 : index
    %82 = vector.load %arg11[%c0_35, %c0_36] : memref<1x32xf32, #tpu.memory_space<vmem>>, vector<1x32xf32>
    %c0_37 = arith.constant 0 : index
    %c0_38 = arith.constant 0 : index
    %83 = vector.load %arg12[%c0_37, %c0_38] : memref<1x32xf32, #tpu.memory_space<vmem>>, vector<1x32xf32>
    %cst_39 = arith.constant dense<0.000000e+00> : vector<8xf32>
    %84 = vector.multi_reduction <add>, %81, %cst_39 [1] : vector<8x32xf32> to vector<8xf32>
    %85 = vector.shape_cast %84 : vector<8xf32> to vector<8x1xf32>
    %cst_40 = arith.constant 3.200000e+01 : f32
    %86 = vector.broadcast %cst_40 : f32 to vector<8x1xf32>
    %87 = arith.divf %85, %86 : vector<8x1xf32>
    %88 = vector.broadcast %87 : vector<8x1xf32> to vector<8x32xf32>
    %89 = arith.subf %81, %88 : vector<8x32xf32>
    %90 = arith.mulf %89, %89 : vector<8x32xf32>
    %cst_41 = arith.constant dense<0.000000e+00> : vector<8xf32>
    %91 = vector.multi_reduction <add>, %90, %cst_41 [1] : vector<8x32xf32> to vector<8xf32>
    %92 = vector.shape_cast %91 : vector<8xf32> to vector<8x1xf32>
    %cst_42 = arith.constant 3.200000e+01 : f32
    %93 = vector.broadcast %cst_42 : f32 to vector<8x1xf32>
    %94 = arith.divf %92, %93 : vector<8x1xf32>
    %95 = vector.broadcast %87 : vector<8x1xf32> to vector<8x32xf32>
    %96 = arith.subf %81, %95 : vector<8x32xf32>
    %cst_43 = arith.constant 9.99999997E-7 : f32
    %97 = vector.broadcast %cst_43 : f32 to vector<8x1xf32>
    %98 = arith.addf %94, %97 : vector<8x1xf32>
    %99 = math.rsqrt %98 : vector<8x1xf32>
    %100 = vector.broadcast %99 : vector<8x1xf32> to vector<8x32xf32>
    %101 = arith.mulf %96, %100 : vector<8x32xf32>
    %102 = vector.broadcast %82 : vector<1x32xf32> to vector<8x32xf32>
    %103 = arith.mulf %101, %102 : vector<8x32xf32>
    %104 = vector.broadcast %83 : vector<1x32xf32> to vector<8x32xf32>
    %105 = arith.addf %103, %104 : vector<8x32xf32>
    %106 = arith.addf %3, %68 : vector<8x32xf32>
    %107 = arith.addf %106, %105 : vector<8x32xf32>
    %c0_44 = arith.constant 0 : index
    %c0_45 = arith.constant 0 : index
    %c0_46 = arith.constant 0 : index
    %108 = vector.load %arg13[%c0_44, %c0_45, %c0_46] : memref<1x8x32xf32, #tpu.memory_space<vmem>>, vector<1x8x32xf32>
    %109 = vector.shape_cast %108 : vector<1x8x32xf32> to vector<8x32xf32>
    %110 = vector.shape_cast %107 : vector<8x32xf32> to vector<1x8x32xf32>
    tpu.vector_store %arg13[%c0_44, %c0_45, %c0_46], %110 {strides = array<i32>} : memref<1x8x32xf32, #tpu.memory_space<vmem>>, vector<1x8x32xf32>,
    return
  }
  func.func @transform_0(%arg0: i32) -> (i32, i32, i32) {
    %c0_i32 = arith.constant 0 : i32
    %c0_i32_0 = arith.constant 0 : i32
    %c0_i32_1 = arith.constant 0 : i32
    return %arg0, %c0_i32, %c0_i32_0 : i32, i32, i32
  }
  func.func @transform_1(%arg0: i32) -> (i32, i32) {
    %c0_i32 = arith.constant 0 : i32
    %c0_i32_0 = arith.constant 0 : i32
    %c0_i32_1 = arith.constant 0 : i32
    return %c0_i32, %c0_i32_0 : i32, i32
  }
  func.func @transform_2(%arg0: i32) -> (i32, i32) {
    %c0_i32 = arith.constant 0 : i32
    %c0_i32_0 = arith.constant 0 : i32
    %c0_i32_1 = arith.constant 0 : i32
    return %c0_i32, %c0_i32_0 : i32, i32
  }
  func.func @transform_3(%arg0: i32) -> (i32, i32) {
    %c0_i32 = arith.constant 0 : i32
    %c0_i32_0 = arith.constant 0 : i32
    %c0_i32_1 = arith.constant 0 : i32
    return %c0_i32, %c0_i32_0 : i32, i32
  }
  func.func @transform_4(%arg0: i32) -> (i32, i32) {
    %c0_i32 = arith.constant 0 : i32
    %c0_i32_0 = arith.constant 0 : i32
    %c0_i32_1 = arith.constant 0 : i32
    return %c0_i32, %c0_i32_0 : i32, i32
  }
  func.func @transform_5(%arg0: i32) -> (i32, i32) {
    %c0_i32 = arith.constant 0 : i32
    %c0_i32_0 = arith.constant 0 : i32
    %c0_i32_1 = arith.constant 0 : i32
    return %c0_i32, %c0_i32_0 : i32, i32
  }
  func.func @transform_6(%arg0: i32) -> (i32, i32) {
    %c0_i32 = arith.constant 0 : i32
    %c0_i32_0 = arith.constant 0 : i32
    %c0_i32_1 = arith.constant 0 : i32
    return %c0_i32, %c0_i32_0 : i32, i32
  }
  func.func @transform_7(%arg0: i32) -> (i32, i32) {
    %c0_i32 = arith.constant 0 : i32
    %c0_i32_0 = arith.constant 0 : i32
    %c0_i32_1 = arith.constant 0 : i32
    return %c0_i32, %c0_i32_0 : i32, i32
  }
  func.func @transform_8(%arg0: i32) -> (i32, i32) {
    %c0_i32 = arith.constant 0 : i32
    %c0_i32_0 = arith.constant 0 : i32
    %c0_i32_1 = arith.constant 0 : i32
    return %c0_i32, %c0_i32_0 : i32, i32
  }
  func.func @transform_9(%arg0: i32) -> (i32, i32) {
    %c0_i32 = arith.constant 0 : i32
    %c0_i32_0 = arith.constant 0 : i32
    %c0_i32_1 = arith.constant 0 : i32
    return %c0_i32, %c0_i32_0 : i32, i32
  }
  func.func @transform_10(%arg0: i32) -> (i32, i32) {
    %c0_i32 = arith.constant 0 : i32
    %c0_i32_0 = arith.constant 0 : i32
    %c0_i32_1 = arith.constant 0 : i32
    return %c0_i32, %c0_i32_0 : i32, i32
  }
  func.func @transform_11(%arg0: i32) -> (i32, i32) {
    %c0_i32 = arith.constant 0 : i32
    %c0_i32_0 = arith.constant 0 : i32
    %c0_i32_1 = arith.constant 0 : i32
    return %c0_i32, %c0_i32_0 : i32, i32
  }
  func.func @transform_12(%arg0: i32) -> (i32, i32, i32) {
    %c0_i32 = arith.constant 0 : i32
    %c0_i32_0 = arith.constant 0 : i32
    %c0_i32_1 = arith.constant 0 : i32
    return %arg0, %c0_i32, %c0_i32_0 : i32, i32, i32
  }
}

</mosaic_0001>

<llo_original>
// kernel: gpt_decoder_forward.5
$region0: #{gpt_decoder_forward.5}
  #allocation0 [shape = 'u32[]', space=smem, size = 0x4, offset = 0x4, fixed_abs, tag = 'smem constant byte address 0x4 - core index']
  #allocation1 [shape = 'u32[144,128]{1,0:T(1,128)}', space=vmem, size = 0x12000, scoped, tag = 'internal scratch']
  %s0 = inlined_call_operand.hbm [shape: f32[16,32], index: 0, kind: input, shape index: {}]
  %s1 = inlined_call_operand.hbm [shape: bf16[32,32], index: 1, kind: input, shape index: {}]
  %s2 = inlined_call_operand.hbm [shape: f32[16,32], index: 2, kind: output, shape index: {}]
  %s3 = sld [smem:[#allocation0]]
  $region26: #{gpt_decoder_forward.5} parent=0
    _
  %s5 = ssub.s32 1, %s3
  %s6 = scalar_select 0, %s5, %s3
  $region1: #{gpt_decoder_forward.5} parent=0
    #allocation2 [shape = 'u8[8192]{0}', space=vmem, size = 0x2000, scoped, tag = 'input window, operand 0, single buffered']
    #allocation3 [shape = 's32[1]{0}', space=sflag, size = 0x4, scoped, tag = 'scoped memory for gpt_decoder_forward.5']
    #allocation4 [shape = 's32[1]{0}', space=sflag, size = 0x4, scoped, tag = 'scoped memory for gpt_decoder_forward.5']
    #allocation5 [shape = 'u8[8192]{0}', space=vmem, size = 0x2000, scoped, tag = 'input window, operand 1, single buffered']
    #allocation6 [shape = 's32[1]{0}', space=sflag, size = 0x4, scoped, tag = 'scoped memory for gpt_decoder_forward.5']
    #allocation7 [shape = 'u8[8192]{0}', space=vmem, size = 0x2000, scoped, tag = 'output window, operand 0, single buffered']
    %7 = vsyncpa [#allocation3], 0
    %8 = vsyncpa [#allocation6], 0
    %9 = vsyncpa [#allocation4], 0
    // Predicated region
    $region2: #{gpt_decoder_forward.5} parent=1 // pred_check
      _
    $region3: #{gpt_decoder_forward.5} parent=1 // pred_check_branch
      %11 = sbr.rel (0) target = $region5
    $region4: #{gpt_decoder_forward.5} parent=1 // pred_region
      %s13 = ssub.s32 256, 256
      %14 = vsyncadd [#allocation3], %s13
      %s15 = sshll.u32 [#allocation2], 4
      %s16 = int_to_ptr.vmem [resolvable:$true] %s15
      %21 = dma.hbm_to_vmem [thread:$0]  %s0, 256, %s16, [#allocation3], 128, 128, 8
    $region5: #{gpt_decoder_forward.5} parent=1 // pred_fallthru
      _
    // Predicated region
    $region6: #{gpt_decoder_forward.5} parent=1 // pred_check
      _
    $region7: #{gpt_decoder_forward.5} parent=1 // pred_check_branch
      %23 = sbr.rel (0) target = $region9
    $region8: #{gpt_decoder_forward.5} parent=1 // pred_region
      %s25 = ssub.s32 256, 256
      %26 = vsyncadd [#allocation6], %s25
      %s27 = sshll.u32 [#allocation5], 4
      %s28 = int_to_ptr.vmem [resolvable:$true] %s27
      %33 = dma.hbm_to_vmem [thread:$0]  %s1, 256, %s28, [#allocation6], 64, 64, 4
    $region9: #{gpt_decoder_forward.5} parent=1 // pred_fallthru
      _
    // Predicated region
    $region10: #{gpt_decoder_forward.5} parent=1 // pred_check
      _
    $region11: #{gpt_decoder_forward.5} parent=1 // pred_check_branch
      %35 = sbr.rel (0) target = $region13
    $region12: #{gpt_decoder_forward.5} parent=1 // pred_region
      %36 = dma.done [#allocation3], 256
    $region13: #{gpt_decoder_forward.5} parent=1 // pred_fallthru
      _
    // Predicated region
    $region14: #{gpt_decoder_forward.5} parent=1 // pred_check
      _
    $region15: #{gpt_decoder_forward.5} parent=1 // pred_check_branch
      %38 = sbr.rel (0) target = $region17
    $region16: #{gpt_decoder_forward.5} parent=1 // pred_region
      %39 = dma.done [#allocation6], 256
    $region17: #{gpt_decoder_forward.5} parent=1 // pred_fallthru
      _
    %v41 = vld [vmem:[#allocation2] sm:$0xff]
    %v42 = vld [vmem:[#allocation2 + $0x8] sm:$0xff]
    %v43 = vpack.c.bf16 %v42, %v41
    %v44 = vld [vmem:[#allocation5] sm:$0xf]
    %v45 = vld [vmem:[#allocation5 + $0x4] sm:$0xf]
    %v46 = vld [vmem:[#allocation5 + $0x8] sm:$0xf]
    %v47 = vld [vmem:[#allocation5 + $0xc] sm:$0xf]
    %v52 = vunpack.c.l.b16 %v44
    %v53 = vunpack.c.l.b16 %v45
    %v54 = vunpack.c.l.b16 %v46
    %v55 = vunpack.c.l.b16 %v47
    %v56 = vpack.c.b16 %v53, %v52
    %v57 = vpack.c.b16 %v55, %v54
    %vm58 = vcmask 261120
    %v60 = vsel %vm58, %v43, 0
    %v63 = vsel %vm58, %v56, 0
    %v66 = vsel %vm58, %v57, 0
    %68 = vmatprep.subr.bf16.mxu0 0
    %69 = vmatpush1.bf16.xpose.msra.mxu0 %v63
    %70 = vmatprep.subr.bf16.mxu0 0
    %71 = vmatpush1.bf16.xpose.msra.mxu0 %v66
    %72 = vmatprep.subr.bf16.mxu0 0
    %73 = vmatpush1.bf16.xpose.msra.mxu0 0
    %74 = vmatprep.subr.bf16.mxu0 0
    %75 = vmatpush1.bf16.xpose.msra.mxu0 0
    %76 = vmatprep.subr.bf16.mxu0 0
    %77 = vmatpush1.bf16.xpose.msra.mxu0 0
    %78 = vmatprep.subr.bf16.mxu0 0
    %79 = vmatpush1.bf16.xpose.msra.mxu0 0
    %80 = vmatprep.subr.bf16.mxu0 0
    %81 = vmatpush1.bf16.xpose.msra.mxu0 0
    %82 = vmatprep.subr.bf16.mxu0 0
    %83 = vmatpush1.bf16.xpose.msra.mxu0 0
    %84 = vmatprep.subr.bf16.mxu0 0
    %85 = vmatpush1.bf16.xpose.msra.mxu0 0
    %86 = vmatprep.subr.bf16.mxu0 0
    %87 = vmatpush1.bf16.xpose.msra.mxu0 0
    %88 = vmatprep.subr.bf16.mxu0 0
    %89 = vmatpush1.bf16.xpose.msra.mxu0 0
    %90 = vmatprep.subr.bf16.mxu0 0
    %91 = vmatpush1.bf16.xpose.msra.mxu0 0
    %92 = vmatprep.subr.bf16.mxu0 0
    %93 = vmatpush1.bf16.xpose.msra.mxu0 0
    %94 = vmatprep.subr.bf16.mxu0 0
    %95 = vmatpush1.bf16.xpose.msra.mxu0 0
    %96 = vmatprep.subr.bf16.mxu0 0
    %97 = vmatpush1.bf16.xpose.msra.mxu0 0
    %98 = vmatprep.subr.bf16.mxu0 0
    %99 = vmatpush1.bf16.xpose.msra.mxu0 0
    %100 = vmatprep.mubr.bf16.mxu0 0
    %101 = vmatmul.mubr.bf16.gmra.mrb[0].mxu0 %v60
    %v102 = vpop.f32.mrb[0].mxu0
    %v103 = vadd.f32 0.0, %v102
    %v104 = vpop.f32.mrb[0].mxu0
    %v105 = vpop.f32.mrb[0].mxu0
    %v106 = vadd.f32 0.0, %v105
    %v107 = vpop.f32.mrb[0].mxu0
    %108 = vdwg.mxu0
    %109 = vst.msk [vmem:[#allocation7] sm:$0xff] %vm58, %v103
    %110 = vst.msk [vmem:[#allocation7 + $0x8] sm:$0xff] %vm58, %v106
    // Predicated region
    $region18: #{gpt_decoder_forward.5} parent=1 // pred_check
      _
    $region19: #{gpt_decoder_forward.5} parent=1 // pred_check_branch
      %112 = sbr.rel (0) target = $region21
    $region20: #{gpt_decoder_forward.5} parent=1 // pred_region
      %s114 = ssub.s32 256, 256
      %115 = vsyncadd [#allocation4], %s114
      %s116 = sshll.u32 [#allocation7], 4
      %s117 = int_to_ptr.vmem [resolvable:$true] %s116
      %122 = dma.vmem_to_hbm [thread:$0]  %s117, 256, %s2, [#allocation4], 128, 128, 8
    $region21: #{gpt_decoder_forward.5} parent=1 // pred_fallthru
      _
    // Predicated region
    $region22: #{gpt_decoder_forward.5} parent=1 // pred_check
      _
    $region23: #{gpt_decoder_forward.5} parent=1 // pred_check_branch
      %124 = sbr.rel (0) target = $region25
    $region24: #{gpt_decoder_forward.5} parent=1 // pred_region
      %125 = dma.done [#allocation4], 256
    $region25: #{gpt_decoder_forward.5} parent=1 // pred_fallthru
      _
    %126 = vsyncpa [#allocation3], 1
    %127 = vsyncpa [#allocation6], 1
    %128 = vsyncpa [#allocation4], 1

// kernel: gpt_decoder_forward.3
$region0: #{gpt_decoder_forward.3}
  #allocation0 [shape = 'u32[]', space=smem, size = 0x4, offset = 0x4, fixed_abs, tag = 'smem constant byte address 0x4 - core index']
  #allocation1 [shape = 'u32[144,128]{1,0:T(1,128)}', space=vmem, size = 0x12000, scoped, tag = 'internal scratch']
  %s0 = inlined_call_operand.hbm [shape: f32[2,8,32], index: 0, kind: input, shape index: {}]
  %s1 = inlined_call_operand.hbm [shape: f32[8,32], index: 1, kind: input, shape index: {}]
  %s2 = inlined_call_operand.hbm [shape: f32[1,32], index: 2, kind: input, shape index: {}]
  %s3 = inlined_call_operand.hbm [shape: f32[1,32], index: 3, kind: input, shape index: {}]
  %s4 = inlined_call_operand.hbm [shape: bf16[32,96], index: 4, kind: input, shape index: {}]
  %s5 = inlined_call_operand.hbm [shape: bf16[32,32], index: 5, kind: input, shape index: {}]
  %s6 = inlined_call_operand.hbm [shape: bf16[32,64], index: 6, kind: input, shape index: {}]
  %s7 = inlined_call_operand.hbm [shape: f32[1,64], index: 7, kind: input, shape index: {}]
  %s8 = inlined_call_operand.hbm [shape: bf16[64,32], index: 8, kind: input, shape index: {}]
  %s9 = inlined_call_operand.hbm [shape: f32[1,32], index: 9, kind: input, shape index: {}]
  %s10 = inlined_call_operand.hbm [shape: f32[1,32], index: 10, kind: input, shape index: {}]
  %s11 = inlined_call_operand.hbm [shape: f32[1,32], index: 11, kind: input, shape index: {}]
  %s12 = inlined_call_operand.hbm [shape: f32[2,8,32], index: 12, kind: output, shape index: {}]
  %s13 = sld [smem:[#allocation0]]
  $region129: #{gpt_decoder_forward.3} parent=0
    _
  %s15 = ssub.s32 1, %s13
  %s16 = scalar_select 0, %s15, %s13
  $region1: #{gpt_decoder_forward.3} parent=0
    #allocation2 [shape = 'u8[8192]{0}', space=vmem, size = 0x2000, scoped, tag = 'input window, operand 0']
    #allocation3 [shape = 's32[2]{0}', space=sflag, size = 0x8, scoped, tag = 'scoped memory for gpt_decoder_forward.3']
    #allocation4 [shape = 's32[2]{0}', space=sflag, size = 0x8, scoped, tag = 'scoped memory for gpt_decoder_forward.3']
    #allocation5 [shape = 'u8[4096]{0}', space=vmem, size = 0x1000, scoped, tag = 'input window, operand 1, single buffered']
    #allocation6 [shape = 's32[1]{0}', space=sflag, size = 0x4, scoped, tag = 'scoped memory for gpt_decoder_forward.3']
    #allocation7 [shape = 'u8[512]{0}', space=vmem, size = 0x400, scoped, tag = 'input window, operand 2, single buffered']
    #allocation8 [shape = 'u8[512]{0}', space=vmem, size = 0x400, scoped, tag = 'input window, operand 3, single buffered']
    #allocation9 [shape = 's32[1]{0}', space=sflag, size = 0x4, scoped, tag = 'scoped memory for gpt_decoder_forward.3']
    #allocation10 [shape = 'u8[8192]{0}', space=vmem, size = 0x2000, scoped, tag = 'input window, operand 4, single buffered']
    #allocation11 [shape = 'u8[8192]{0}', space=vmem, size = 0x2000, scoped, tag = 'input window, operand 5, single buffered']
    #allocation12 [shape = 's32[1]{0}', space=sflag, size = 0x4, scoped, tag = 'scoped memory for gpt_decoder_forward.3']
    #allocation13 [shape = 'u8[8192]{0}', space=vmem, size = 0x2000, scoped, tag = 'input window, operand 6, single buffered']
    #allocation14 [shape = 'u8[512]{0}', space=vmem, size = 0x400, scoped, tag = 'input window, operand 7, single buffered']
    #allocation15 [shape = 's32[1]{0}', space=sflag, size = 0x4, scoped, tag = 'scoped memory for gpt_decoder_forward.3']
    #allocation16 [shape = 'u8[16384]{0}', space=vmem, size = 0x4000, scoped, tag = 'input window, operand 8, single buffered']
    #allocation17 [shape = 'u8[512]{0}', space=vmem, size = 0x400, scoped, tag = 'input window, operand 9, single buffered']
    #allocation18 [shape = 's32[1]{0}', space=sflag, size = 0x4, scoped, tag = 'scoped memory for gpt_decoder_forward.3']
    #allocation19 [shape = 'u8[512]{0}', space=vmem, size = 0x400, scoped, tag = 'input window, operand 10, single buffered']
    #allocation20 [shape = 'u8[512]{0}', space=vmem, size = 0x400, scoped, tag = 'input window, operand 11, single buffered']
    #allocation21 [shape = 's32[1]{0}', space=sflag, size = 0x4, scoped, tag = 'scoped memory for gpt_decoder_forward.3']
    #allocation22 [shape = 'u8[8192]{0}', space=vmem, size = 0x2000, scoped, tag = 'output window, operand 0']
    %17 = vsyncpa [#allocation3], 0
    %s18 = scalar_lea.sflag [#allocation3], 1
    %19 = vsyncpa %s18, 0
    %20 = vsyncpa [#allocation6], 0
    %21 = vsyncpa [#allocation9], 0
    %22 = vsyncpa [#allocation12], 0
    %23 = vsyncpa [#allocation15], 0
    %24 = vsyncpa [#allocation18], 0
    %25 = vsyncpa [#allocation21], 0
    %26 = vsyncpa [#allocation4], 0
    %s27 = scalar_lea.sflag [#allocation4], 1
    %28 = vsyncpa %s27, 0
    loop: start=0, step=1, limit=4
    $region2: #{gpt_decoder_forward.3} parent=1 // loop_pre_header
      _
    $region3: #{gpt_decoder_forward.3} parent=1 // loop_header
      %s30 = sphi 0, %s34
      %p31 = scmp.ge.s32.totalorder %s30, 4
      %s40 = sphi 0, %s42
      %s43 = sphi 0, %s40
      %s44 = sphi 0, %s43
      %s60 = sphi 0, %s44
      %s64 = sphi 0, %s64
      %s66 = sphi 0, %s64
      %s67 = sphi 0, %s66
      %s81 = sphi 0, %s67
      %s85 = sphi 0, %s85
      %s87 = sphi 0, %s85
      %s88 = sphi 0, %s87
      %s102 = sphi 0, %s88
      %s106 = sphi 0, %s106
      %s108 = sphi 0, %s106
      %s109 = sphi 0, %s108
      %s123 = sphi 0, %s109
      %s127 = sphi 0, %s127
      %s129 = sphi 0, %s127
      %s130 = sphi 0, %s129
      %s144 = sphi 0, %s130
      %s148 = sphi 0, %s148
      %s150 = sphi 0, %s148
      %s151 = sphi 0, %s150
      %s165 = sphi 0, %s151
      %s169 = sphi 0, %s169
      %s171 = sphi 0, %s169
      %s172 = sphi 0, %s171
      %s186 = sphi 0, %s172
      %s190 = sphi 0, %s190
      %s192 = sphi 0, %s190
      %s193 = sphi 0, %s192
      %s207 = sphi 0, %s193
      %s211 = sphi 0, %s211
      %s213 = sphi 0, %s211
      %s214 = sphi 0, %s213
      %s228 = sphi 0, %s214
      %s232 = sphi 0, %s232
      %s234 = sphi 0, %s232
      %s235 = sphi 0, %s234
      %s249 = sphi 0, %s235
      %s253 = sphi 0, %s253
      %s255 = sphi 0, %s253
      %s256 = sphi 0, %s255
      %s270 = sphi 0, %s256
      %s274 = sphi 0, %s274
      %s276 = sphi 0, %s274
      %s277 = sphi 0, %s276
      %s291 = sphi 0, %s277
      %s297 = sphi 0, %s299
      %s300 = sphi 0, %s297
      %s301 = sphi 0, %s300
      %s317 = sphi 0, %s301
    $region4: #{gpt_decoder_forward.3} parent=1 // loop_header_branch
      %33 = sbr.rel (%p31) target = $region8
    $region5: #{gpt_decoder_forward.3} parent=1 // loop_body
      %s35 = ssub.s32 %s30, 1
      %s36 = ssub.s32 %s30, 2
      %s37 = sadd.s32 %s30, 1
      %s38 = ssub.s32 %s30, %s37
      %p39 = scmp.eq.s32.totalorder %s38, 0
      %s41 = sadd.s32 %s40, 1
      %s42 = scalar_select %p39, %s40, %s41
      %p45 = pneg %p39
      %p46 = scmp.eq.s32.totalorder %s30, 1
      %p47 = por %p45, %p46
      %p48 = scmp.ne.s32.totalorder %s40, %s43
      %p49 = scmp.eq.s32.totalorder %s30, 0
      %p50 = por %p48, %p49
      %p51 = scmp.ne.s32.totalorder %s40, %s43
      %p52 = scmp.eq.s32.totalorder %s35, 1
      %p53 = por %p51, %p52
      %p54 = scmp.ne.s32.totalorder %s43, %s44
      %p55 = scmp.eq.s32.totalorder %s35, 0
      %p56 = por %p54, %p55
      %p57 = scmp.ne.s32.totalorder %s43, %s44
      %p58 = scmp.eq.s32.totalorder %s36, 1
      %p59 = por %p57, %p58
      %p61 = scmp.ne.s32.totalorder %s44, %s60
      %p62 = scmp.eq.s32.totalorder %s36, 0
      %p63 = por %p61, %p62
      %s65 = sadd.s32 %s64, 1
      %p68 = scmp.eq.s32.totalorder %s30, 1
      %p69 = scmp.ne.s32.totalorder %s64, %s66
      %p70 = scmp.eq.s32.totalorder %s30, 0
      %p71 = por %p69, %p70
      %p72 = scmp.ne.s32.totalorder %s64, %s66
      %p73 = scmp.eq.s32.totalorder %s35, 1
      %p74 = por %p72, %p73
      %p75 = scmp.ne.s32.totalorder %s66, %s67
      %p76 = scmp.eq.s32.totalorder %s35, 0
      %p77 = por %p75, %p76
      %p78 = scmp.ne.s32.totalorder %s66, %s67
      %p79 = scmp.eq.s32.totalorder %s36, 1
      %p80 = por %p78, %p79
      %p82 = scmp.ne.s32.totalorder %s67, %s81
      %p83 = scmp.eq.s32.totalorder %s36, 0
      %p84 = por %p82, %p83
      %s86 = sadd.s32 %s85, 1
      %p89 = scmp.eq.s32.totalorder %s30, 1
      %p90 = scmp.ne.s32.totalorder %s85, %s87
      %p91 = scmp.eq.s32.totalorder %s30, 0
      %p92 = por %p90, %p91
      %p93 = scmp.ne.s32.totalorder %s85, %s87
      %p94 = scmp.eq.s32.totalorder %s35, 1
      %p95 = por %p93, %p94
      %p96 = scmp.ne.s32.totalorder %s87, %s88
      %p97 = scmp.eq.s32.totalorder %s35, 0
      %p98 = por %p96, %p97
      %p99 = scmp.ne.s32.totalorder %s87, %s88
      %p100 = scmp.eq.s32.totalorder %s36, 1
      %p101 = por %p99, %p100
      %p103 = scmp.ne.s32.totalorder %s88, %s102
      %p104 = scmp.eq.s32.totalorder %s36, 0
      %p105 = por %p103, %p104
      %s107 = sadd.s32 %s106, 1
      %p110 = scmp.eq.s32.totalorder %s30, 1
      %p111 = scmp.ne.s32.totalorder %s106, %s108
      %p112 = scmp.eq.s32.totalorder %s30, 0
      %p113 = por %p111, %p112
      %p114 = scmp.ne.s32.totalorder %s106, %s108
      %p115 = scmp.eq.s32.totalorder %s35, 1
      %p116 = por %p114, %p115
      %p117 = scmp.ne.s32.totalorder %s108, %s109
      %p118 = scmp.eq.s32.totalorder %s35, 0
      %p119 = por %p117, %p118
      %p120 = scmp.ne.s32.totalorder %s108, %s109
      %p121 = scmp.eq.s32.totalorder %s36, 1
      %p122 = por %p120, %p121
      %p124 = scmp.ne.s32.totalorder %s109, %s123
      %p125 = scmp.eq.s32.totalorder %s36, 0
      %p126 = por %p124, %p125
      %s128 = sadd.s32 %s127, 1
      %p131 = scmp.eq.s32.totalorder %s30, 1
      %p132 = scmp.ne.s32.totalorder %s127, %s129
      %p133 = scmp.eq.s32.totalorder %s30, 0
      %p134 = por %p132, %p133
      %p135 = scmp.ne.s32.totalorder %s127, %s129
      %p136 = scmp.eq.s32.totalorder %s35, 1
      %p137 = por %p135, %p136
      %p138 = scmp.ne.s32.totalorder %s129, %s130
      %p139 = scmp.eq.s32.totalorder %s35, 0
      %p140 = por %p138, %p139
      %p141 = scmp.ne.s32.totalorder %s129, %s130
      %p142 = scmp.eq.s32.totalorder %s36, 1
      %p143 = por %p141, %p142
      %p145 = scmp.ne.s32.totalorder %s130, %s144
      %p146 = scmp.eq.s32.totalorder %s36, 0
      %p147 = por %p145, %p146
      %s149 = sadd.s32 %s148, 1
      %p152 = scmp.eq.s32.totalorder %s30, 1
      %p153 = scmp.ne.s32.totalorder %s148, %s150
      %p154 = scmp.eq.s32.totalorder %s30, 0
      %p155 = por %p153, %p154
      %p156 = scmp.ne.s32.totalorder %s148, %s150
      %p157 = scmp.eq.s32.totalorder %s35, 1
      %p158 = por %p156, %p157
      %p159 = scmp.ne.s32.totalorder %s150, %s151
      %p160 = scmp.eq.s32.totalorder %s35, 0
      %p161 = por %p159, %p160
      %p162 = scmp.ne.s32.totalorder %s150, %s151
      %p163 = scmp.eq.s32.totalorder %s36, 1
      %p164 = por %p162, %p163
      %p166 = scmp.ne.s32.totalorder %s151, %s165
      %p167 = scmp.eq.s32.totalorder %s36, 0
      %p168 = por %p166, %p167
      %s170 = sadd.s32 %s169, 1
      %p173 = scmp.eq.s32.totalorder %s30, 1
      %p174 = scmp.ne.s32.totalorder %s169, %s171
      %p175 = scmp.eq.s32.totalorder %s30, 0
      %p176 = por %p174, %p175
      %p177 = scmp.ne.s32.totalorder %s169, %s171
      %p178 = scmp.eq.s32.totalorder %s35, 1
      %p179 = por %p177, %p178
      %p180 = scmp.ne.s32.totalorder %s171, %s172
      %p181 = scmp.eq.s32.totalorder %s35, 0
      %p182 = por %p180, %p181
      %p183 = scmp.ne.s32.totalorder %s171, %s172
      %p184 = scmp.eq.s32.totalorder %s36, 1
      %p185 = por %p183, %p184
      %p187 = scmp.ne.s32.totalorder %s172, %s186
      %p188 = scmp.eq.s32.totalorder %s36, 0
      %p189 = por %p187, %p188
      %s191 = sadd.s32 %s190, 1
      %p194 = scmp.eq.s32.totalorder %s30, 1
      %p195 = scmp.ne.s32.totalorder %s190, %s192
      %p196 = scmp.eq.s32.totalorder %s30, 0
      %p197 = por %p195, %p196
      %p198 = scmp.ne.s32.totalorder %s190, %s192
      %p199 = scmp.eq.s32.totalorder %s35, 1
      %p200 = por %p198, %p199
      %p201 = scmp.ne.s32.totalorder %s192, %s193
      %p202 = scmp.eq.s32.totalorder %s35, 0
      %p203 = por %p201, %p202
      %p204 = scmp.ne.s32.totalorder %s192, %s193
      %p205 = scmp.eq.s32.totalorder %s36, 1
      %p206 = por %p204, %p205
      %p208 = scmp.ne.s32.totalorder %s193, %s207
      %p209 = scmp.eq.s32.totalorder %s36, 0
      %p210 = por %p208, %p209
      %s212 = sadd.s32 %s211, 1
      %p215 = scmp.eq.s32.totalorder %s30, 1
      %p216 = scmp.ne.s32.totalorder %s211, %s213
      %p217 = scmp.eq.s32.totalorder %s30, 0
      %p218 = por %p216, %p217
      %p219 = scmp.ne.s32.totalorder %s211, %s213
      %p220 = scmp.eq.s32.totalorder %s35, 1
      %p221 = por %p219, %p220
      %p222 = scmp.ne.s32.totalorder %s213, %s214
      %p223 = scmp.eq.s32.totalorder %s35, 0
      %p224 = por %p222, %p223
      %p225 = scmp.ne.s32.totalorder %s213, %s214
      %p226 = scmp.eq.s32.totalorder %s36, 1
      %p227 = por %p225, %p226
      %p229 = scmp.ne.s32.totalorder %s214, %s228
      %p230 = scmp.eq.s32.totalorder %s36, 0
      %p231 = por %p229, %p230
      %s233 = sadd.s32 %s232, 1
      %p236 = scmp.eq.s32.totalorder %s30, 1
      %p237 = scmp.ne.s32.totalorder %s232, %s234
      %p238 = scmp.eq.s32.totalorder %s30, 0
      %p239 = por %p237, %p238
      %p240 = scmp.ne.s32.totalorder %s232, %s234
      %p241 = scmp.eq.s32.totalorder %s35, 1
      %p242 = por %p240, %p241
      %p243 = scmp.ne.s32.totalorder %s234, %s235
      %p244 = scmp.eq.s32.totalorder %s35, 0
      %p245 = por %p243, %p244
      %p246 = scmp.ne.s32.totalorder %s234, %s235
      %p247 = scmp.eq.s32.totalorder %s36, 1
      %p248 = por %p246, %p247
      %p250 = scmp.ne.s32.totalorder %s235, %s249
      %p251 = scmp.eq.s32.totalorder %s36, 0
      %p252 = por %p250, %p251
      %s254 = sadd.s32 %s253, 1
      %p257 = scmp.eq.s32.totalorder %s30, 1
      %p258 = scmp.ne.s32.totalorder %s253, %s255
      %p259 = scmp.eq.s32.totalorder %s30, 0
      %p260 = por %p258, %p259
      %p261 = scmp.ne.s32.totalorder %s253, %s255
      %p262 = scmp.eq.s32.totalorder %s35, 1
      %p263 = por %p261, %p262
      %p264 = scmp.ne.s32.totalorder %s255, %s256
      %p265 = scmp.eq.s32.totalorder %s35, 0
      %p266 = por %p264, %p265
      %p267 = scmp.ne.s32.totalorder %s255, %s256
      %p268 = scmp.eq.s32.totalorder %s36, 1
      %p269 = por %p267, %p268
      %p271 = scmp.ne.s32.totalorder %s256, %s270
      %p272 = scmp.eq.s32.totalorder %s36, 0
      %p273 = por %p271, %p272
      %s275 = sadd.s32 %s274, 1
      %p278 = scmp.eq.s32.totalorder %s30, 1
      %p279 = scmp.ne.s32.totalorder %s274, %s276
      %p280 = scmp.eq.s32.totalorder %s30, 0
      %p281 = por %p279, %p280
      %p282 = scmp.ne.s32.totalorder %s274, %s276
      %p283 = scmp.eq.s32.totalorder %s35, 1
      %p284 = por %p282, %p283
      %p285 = scmp.ne.s32.totalorder %s276, %s277
      %p286 = scmp.eq.s32.totalorder %s35, 0
      %p287 = por %p285, %p286
      %p288 = scmp.ne.s32.totalorder %s276, %s277
      %p289 = scmp.eq.s32.totalorder %s36, 1
      %p290 = por %p288, %p289
      %p292 = scmp.ne.s32.totalorder %s277, %s291
      %p293 = scmp.eq.s32.totalorder %s36, 0
      %p294 = por %p292, %p293
      %s295 = ssub.s32 %s30, %s37
      %p296 = scmp.eq.s32.totalorder %s295, 0
      %s298 = sadd.s32 %s297, 1
      %s299 = scalar_select %p296, %s297, %s298
      %p302 = pneg %p296
      %p303 = scmp.eq.s32.totalorder %s30, 1
      %p304 = por %p302, %p303
      %p305 = scmp.ne.s32.totalorder %s297, %s300
      %p306 = scmp.eq.s32.totalorder %s30, 0
      %p307 = por %p305, %p306
      %p308 = scmp.ne.s32.totalorder %s297, %s300
      %p309 = scmp.eq.s32.totalorder %s35, 1
      %p310 = por %p308, %p309
      %p311 = scmp.ne.s32.totalorder %s300, %s301
      %p312 = scmp.eq.s32.totalorder %s35, 0
      %p313 = por %p311, %p312
      %p314 = scmp.ne.s32.totalorder %s300, %s301
      %p315 = scmp.eq.s32.totalorder %s36, 1
      %p316 = por %p314, %p315
      %p318 = scmp.ne.s32.totalorder %s301, %s317
      %p319 = scmp.eq.s32.totalorder %s36, 0
      %p320 = por %p318, %p319
      %p321 = scmp.le.s32.totalorder 1, %s30
      %p322 = scmp.lt.s32.totalorder %s30, 3
      %p323 = pnand %p321, %p322
      %p324 = pneg %p323
      // Predicated region
      $region9: #{gpt_decoder_forward.3} parent=5 // pred_check
        _
      $region10: #{gpt_decoder_forward.3} parent=5 // pred_check_branch
        %326 = sbr.rel (%p323) target = $region12
      $region11: #{gpt_decoder_forward.3} parent=5 // pred_region
        %s327 = ssub.s32 %s30, 1
        // Predicated region
        $region13: #{gpt_decoder_forward.3} parent=11 // pred_check
          %p328 = pneg %p77
        $region14: #{gpt_decoder_forward.3} parent=11 // pred_check_branch
          %330 = sbr.rel (%p328) target = $region16
        $region15: #{gpt_decoder_forward.3} parent=11 // pred_region
          %s332 = ssub.s32 128, 128
          %333 = vsyncadd [#allocation6], %s332
          %s335 = sshll.u32 [#allocation5], 4
          %s336 = int_to_ptr.vmem [resolvable:$true] %s335
          %338 = dma.hbm_to_vmem [thread:$0]  %s1, 128, %s336, [#allocation6]
        $region16: #{gpt_decoder_forward.3} parent=11 // pred_fallthru
          _
        // Predicated region
        $region17: #{gpt_decoder_forward.3} parent=11 // pred_check
          %p339 = pneg %p98
        $region18: #{gpt_decoder_forward.3} parent=11 // pred_check_branch
          %341 = sbr.rel (%p339) target = $region20
        $region19: #{gpt_decoder_forward.3} parent=11 // pred_region
          %s343 = ssub.s32 16, 16
          %344 = vsyncadd [#allocation6], %s343
          %s346 = sshll.u32 [#allocation7], 4
          %s347 = int_to_ptr.vmem [resolvable:$true] %s346
          %349 = dma.hbm_to_vmem [thread:$0]  %s2, 16, %s347, [#allocation6]
        $region20: #{gpt_decoder_forward.3} parent=11 // pred_fallthru
          _
        // Predicated region
        $region21: #{gpt_decoder_forward.3} parent=11 // pred_check
          %p350 = pneg %p119
        $region22: #{gpt_decoder_forward.3} parent=11 // pred_check_branch
          %352 = sbr.rel (%p350) target = $region24
        $region23: #{gpt_decoder_forward.3} parent=11 // pred_region
          %s354 = ssub.s32 16, 16
          %355 = vsyncadd [#allocation9], %s354
          %s357 = sshll.u32 [#allocation8], 4
          %s358 = int_to_ptr.vmem [resolvable:$true] %s357
          %360 = dma.hbm_to_vmem [thread:$0]  %s3, 16, %s358, [#allocation9]
        $region24: #{gpt_decoder_forward.3} parent=11 // pred_fallthru
          _
        // Predicated region
        $region25: #{gpt_decoder_forward.3} parent=11 // pred_check
          %p361 = pneg %p140
        $region26: #{gpt_decoder_forward.3} parent=11 // pred_check_branch
          %363 = sbr.rel (%p361) target = $region28
        $region27: #{gpt_decoder_forward.3} parent=11 // pred_region
          %s365 = ssub.s32 256, 256
          %366 = vsyncadd [#allocation9], %s365
          %s367 = sshll.u32 [#allocation10], 4
          %s368 = int_to_ptr.vmem [resolvable:$true] %s367
          %373 = dma.hbm_to_vmem [thread:$0]  %s4, 256, %s368, [#allocation9], 64, 64, 4
        $region28: #{gpt_decoder_forward.3} parent=11 // pred_fallthru
          _
        // Predicated region
        $region29: #{gpt_decoder_forward.3} parent=11 // pred_check
          %p374 = pneg %p161
        $region30: #{gpt_decoder_forward.3} parent=11 // pred_check_branch
          %376 = sbr.rel (%p374) target = $region32
        $region31: #{gpt_decoder_forward.3} parent=11 // pred_region
          %s378 = ssub.s32 256, 256
          %379 = vsyncadd [#allocation12], %s378
          %s380 = sshll.u32 [#allocation11], 4
          %s381 = int_to_ptr.vmem [resolvable:$true] %s380
          %386 = dma.hbm_to_vmem [thread:$0]  %s5, 256, %s381, [#allocation12], 64, 64, 4
        $region32: #{gpt_decoder_forward.3} parent=11 // pred_fallthru
          _
        // Predicated region
        $region33: #{gpt_decoder_forward.3} parent=11 // pred_check
          %p387 = pneg %p182
        $region34: #{gpt_decoder_forward.3} parent=11 // pred_check_branch
          %389 = sbr.rel (%p387) target = $region36
        $region35: #{gpt_decoder_forward.3} parent=11 // pred_region
          %s391 = ssub.s32 256, 256
          %392 = vsyncadd [#allocation12], %s391
          %s393 = sshll.u32 [#allocation13], 4
          %s394 = int_to_ptr.vmem [resolvable:$true] %s393
          %399 = dma.hbm_to_vmem [thread:$0]  %s6, 256, %s394, [#allocation12], 64, 64, 4
        $region36: #{gpt_decoder_forward.3} parent=11 // pred_fallthru
          _
        // Predicated region
        $region37: #{gpt_decoder_forward.3} parent=11 // pred_check
          %p400 = pneg %p203
        $region38: #{gpt_decoder_forward.3} parent=11 // pred_check_branch
          %402 = sbr.rel (%p400) target = $region40
        $region39: #{gpt_decoder_forward.3} parent=11 // pred_region
          %s404 = ssub.s32 16, 16
          %405 = vsyncadd [#allocation15], %s404
          %s407 = sshll.u32 [#allocation14], 4
          %s408 = int_to_ptr.vmem [resolvable:$true] %s407
          %410 = dma.hbm_to_vmem [thread:$0]  %s7, 16, %s408, [#allocation15]
        $region40: #{gpt_decoder_forward.3} parent=11 // pred_fallthru
          _
        // Predicated region
        $region41: #{gpt_decoder_forward.3} parent=11 // pred_check
          %p411 = pneg %p224
        $region42: #{gpt_decoder_forward.3} parent=11 // pred_check_branch
          %413 = sbr.rel (%p411) target = $region44
        $region43: #{gpt_decoder_forward.3} parent=11 // pred_region
          %s415 = ssub.s32 512, 512
          %416 = vsyncadd [#allocation15], %s415
          %s417 = sshll.u32 [#allocation16], 4
          %s418 = int_to_ptr.vmem [resolvable:$true] %s417
          %423 = dma.hbm_to_vmem [thread:$0]  %s8, 512, %s418, [#allocation15], 64, 64, 4
        $region44: #{gpt_decoder_forward.3} parent=11 // pred_fallthru
          _
        // Predicated region
        $region45: #{gpt_decoder_forward.3} parent=11 // pred_check
          %p424 = pneg %p245
        $region46: #{gpt_decoder_forward.3} parent=11 // pred_check_branch
          %426 = sbr.rel (%p424) target = $region48
        $region47: #{gpt_decoder_forward.3} parent=11 // pred_region
          %s428 = ssub.s32 16, 16
          %429 = vsyncadd [#allocation18], %s428
          %s431 = sshll.u32 [#allocation17], 4
          %s432 = int_to_ptr.vmem [resolvable:$true] %s431
          %434 = dma.hbm_to_vmem [thread:$0]  %s9, 16, %s432, [#allocation18]
        $region48: #{gpt_decoder_forward.3} parent=11 // pred_fallthru
          _
        // Predicated region
        $region49: #{gpt_decoder_forward.3} parent=11 // pred_check
          %p435 = pneg %p266
        $region50: #{gpt_decoder_forward.3} parent=11 // pred_check_branch
          %437 = sbr.rel (%p435) target = $region52
        $region51: #{gpt_decoder_forward.3} parent=11 // pred_region
          %s439 = ssub.s32 16, 16
          %440 = vsyncadd [#allocation18], %s439
          %s442 = sshll.u32 [#allocation19], 4
          %s443 = int_to_ptr.vmem [resolvable:$true] %s442
          %445 = dma.hbm_to_vmem [thread:$0]  %s10, 16, %s443, [#allocation18]
        $region52: #{gpt_decoder_forward.3} parent=11 // pred_fallthru
          _
        // Predicated region
        $region53: #{gpt_decoder_forward.3} parent=11 // pred_check
          %p446 = pneg %p287
        $region54: #{gpt_decoder_forward.3} parent=11 // pred_check_branch
          %448 = sbr.rel (%p446) target = $region56
        $region55: #{gpt_decoder_forward.3} parent=11 // pred_region
          %s450 = ssub.s32 16, 16
          %451 = vsyncadd [#allocation21], %s450
          %s453 = sshll.u32 [#allocation20], 4
          %s454 = int_to_ptr.vmem [resolvable:$true] %s453
          %456 = dma.hbm_to_vmem [thread:$0]  %s11, 16, %s454, [#allocation21]
        $region56: #{gpt_decoder_forward.3} parent=11 // pred_fallthru
          _
      $region12: #{gpt_decoder_forward.3} parent=5 // pred_fallthru
        _
      %p457 = scmp.lt.s32.totalorder %s30, 2
      // Predicated region
      $region57: #{gpt_decoder_forward.3} parent=5 // pred_check
        %p458 = pneg %p457
      $region58: #{gpt_decoder_forward.3} parent=5 // pred_check_branch
        %460 = sbr.rel (%p458) target = $region60
      $region59: #{gpt_decoder_forward.3} parent=5 // pred_region
        // Predicated region
        $region61: #{gpt_decoder_forward.3} parent=59 // pred_check
          %p461 = pneg %p50
        $region62: #{gpt_decoder_forward.3} parent=59 // pred_check_branch
          %463 = sbr.rel (%p461) target = $region64
        $region63: #{gpt_decoder_forward.3} parent=59 // pred_region
          %s464 = sand.u32 %s40, 1
          %s465 = scalar_lea.sflag [#allocation3], %s464
          %s466 = sand.u32 %s40, 1
          %s467 = smul.addr %s466, 8
          %s468 = scalar_lea.vmem [#allocation2], %s467
          %s470 = ssub.s32 128, 128
          %471 = vsyncadd %s465, %s470
          %s472 = smul.addr %s30, 128
          %s473 = scalar_lea.hbm %s0, %s472
          %s475 = sshll.u32 %s468, 4
          %s476 = int_to_ptr.vmem [resolvable:$true] %s475
          %478 = dma.hbm_to_vmem [thread:$0]  %s473, 128, %s476, %s465
        $region64: #{gpt_decoder_forward.3} parent=59 // pred_fallthru
          _
      $region60: #{gpt_decoder_forward.3} parent=5 // pred_fallthru
        _
      %p479 = scmp.le.s32.totalorder 1, %s30
      %p480 = scmp.lt.s32.totalorder %s30, 3
      %p481 = pnand %p479, %p480
      %p482 = pneg %p481
      // Predicated region
      $region65: #{gpt_decoder_forward.3} parent=5 // pred_check
        _
      $region66: #{gpt_decoder_forward.3} parent=5 // pred_check_branch
        %484 = sbr.rel (%p481) target = $region68
      $region67: #{gpt_decoder_forward.3} parent=5 // pred_region
        %s485 = ssub.s32 %s30, 1
        %s486 = sand.u32 %s43, 1
        %s487 = scalar_lea.sflag [#allocation3], %s486
        %s488 = sand.u32 %s43, 1
        %s489 = smul.addr %s488, 8
        %s490 = scalar_lea.vmem [#allocation2], %s489
        // Predicated region
        $region69: #{gpt_decoder_forward.3} parent=67 // pred_check
          %p491 = pneg %p56
        $region70: #{gpt_decoder_forward.3} parent=67 // pred_check_branch
          %493 = sbr.rel (%p491) target = $region72
        $region71: #{gpt_decoder_forward.3} parent=67 // pred_region
          %494 = dma.done %s487, 128
        $region72: #{gpt_decoder_forward.3} parent=67 // pred_fallthru
          _
        // Predicated region
        $region73: #{gpt_decoder_forward.3} parent=67 // pred_check
          %p495 = pneg %p77
        $region74: #{gpt_decoder_forward.3} parent=67 // pred_check_branch
          %497 = sbr.rel (%p495) target = $region76
        $region75: #{gpt_decoder_forward.3} parent=67 // pred_region
          %498 = dma.done [#allocation6], 128
        $region76: #{gpt_decoder_forward.3} parent=67 // pred_fallthru
          _
        // Predicated region
        $region77: #{gpt_decoder_forward.3} parent=67 // pred_check
          %p499 = pneg %p98
        $region78: #{gpt_decoder_forward.3} parent=67 // pred_check_branch
          %501 = sbr.rel (%p499) target = $region80
        $region79: #{gpt_decoder_forward.3} parent=67 // pred_region
          %502 = dma.done [#allocation6], 16
        $region80: #{gpt_decoder_forward.3} parent=67 // pred_fallthru
          _
        // Predicated region
        $region81: #{gpt_decoder_forward.3} parent=67 // pred_check
          %p503 = pneg %p119
        $region82: #{gpt_decoder_forward.3} parent=67 // pred_check_branch
          %505 = sbr.rel (%p503) target = $region84
        $region83: #{gpt_decoder_forward.3} parent=67 // pred_region
          %506 = dma.done [#allocation9], 16
        $region84: #{gpt_decoder_forward.3} parent=67 // pred_fallthru
          _
        // Predicated region
        $region85: #{gpt_decoder_forward.3} parent=67 // pred_check
          %p507 = pneg %p140
        $region86: #{gpt_decoder_forward.3} parent=67 // pred_check_branch
          %509 = sbr.rel (%p507) target = $region88
        $region87: #{gpt_decoder_forward.3} parent=67 // pred_region
          %510 = dma.done [#allocation9], 256
        $region88: #{gpt_decoder_forward.3} parent=67 // pred_fallthru
          _
        // Predicated region
        $region89: #{gpt_decoder_forward.3} parent=67 // pred_check
          %p511 = pneg %p161
        $region90: #{gpt_decoder_forward.3} parent=67 // pred_check_branch
          %513 = sbr.rel (%p511) target = $region92
        $region91: #{gpt_decoder_forward.3} parent=67 // pred_region
          %514 = dma.done [#allocation12], 256
        $region92: #{gpt_decoder_forward.3} parent=67 // pred_fallthru
          _
        // Predicated region
        $region93: #{gpt_decoder_forward.3} parent=67 // pred_check
          %p515 = pneg %p182
        $region94: #{gpt_decoder_forward.3} parent=67 // pred_check_branch
          %517 = sbr.rel (%p515) target = $region96
        $region95: #{gpt_decoder_forward.3} parent=67 // pred_region
          %518 = dma.done [#allocation12], 256
        $region96: #{gpt_decoder_forward.3} parent=67 // pred_fallthru
          _
        // Predicated region
        $region97: #{gpt_decoder_forward.3} parent=67 // pred_check
          %p519 = pneg %p203
        $region98: #{gpt_decoder_forward.3} parent=67 // pred_check_branch
          %521 = sbr.rel (%p519) target = $region100
        $region99: #{gpt_decoder_forward.3} parent=67 // pred_region
          %522 = dma.done [#allocation15], 16
        $region100: #{gpt_decoder_forward.3} parent=67 // pred_fallthru
          _
        // Predicated region
        $region101: #{gpt_decoder_forward.3} parent=67 // pred_check
          %p523 = pneg %p224
        $region102: #{gpt_decoder_forward.3} parent=67 // pred_check_branch
          %525 = sbr.rel (%p523) target = $region104
        $region103: #{gpt_decoder_forward.3} parent=67 // pred_region
          %526 = dma.done [#allocation15], 512
        $region104: #{gpt_decoder_forward.3} parent=67 // pred_fallthru
          _
        // Predicated region
        $region105: #{gpt_decoder_forward.3} parent=67 // pred_check
          %p527 = pneg %p245
        $region106: #{gpt_decoder_forward.3} parent=67 // pred_check_branch
          %529 = sbr.rel (%p527) target = $region108
        $region107: #{gpt_decoder_forward.3} parent=67 // pred_region
          %530 = dma.done [#allocation18], 16
        $region108: #{gpt_decoder_forward.3} parent=67 // pred_fallthru
          _
        // Predicated region
        $region109: #{gpt_decoder_forward.3} parent=67 // pred_check
          %p531 = pneg %p266
        $region110: #{gpt_decoder_forward.3} parent=67 // pred_check_branch
          %533 = sbr.rel (%p531) target = $region112
        $region111: #{gpt_decoder_forward.3} parent=67 // pred_region
          %534 = dma.done [#allocation18], 16
        $region112: #{gpt_decoder_forward.3} parent=67 // pred_fallthru
          _
        // Predicated region
        $region113: #{gpt_decoder_forward.3} parent=67 // pred_check
          %p535 = pneg %p287
        $region114: #{gpt_decoder_forward.3} parent=67 // pred_check_branch
          %537 = sbr.rel (%p535) target = $region116
        $region115: #{gpt_decoder_forward.3} parent=67 // pred_region
          %538 = dma.done [#allocation21], 16
        $region116: #{gpt_decoder_forward.3} parent=67 // pred_fallthru
          _
        %s539 = sand.u32 %s43, 1
        %s540 = scalar_lea.sflag [#allocation3], %s539
        %s541 = sand.u32 %s43, 1
        %s542 = smul.addr %s541, 8
        %s543 = scalar_lea.vmem [#allocation2], %s542
        %p544 = pneg %p56
        %p545 = pneg %p53
        %p546 = pneg %p77
        %p547 = pneg %p74
        %p548 = pneg %p98
        %p549 = pneg %p95
        %p550 = pneg %p119
        %p551 = pneg %p116
        %p552 = pneg %p140
        %p553 = pneg %p137
        %p554 = pneg %p161
        %p555 = pneg %p158
        %p556 = pneg %p182
        %p557 = pneg %p179
        %p558 = pneg %p203
        %p559 = pneg %p200
        %p560 = pneg %p224
        %p561 = pneg %p221
        %p562 = pneg %p245
        %p563 = pneg %p242
        %p564 = pneg %p266
        %p565 = pneg %p263
        %p566 = pneg %p287
        %p567 = pneg %p284
        %p568 = pneg %p313
        %p569 = pneg %p310
        %s570 = sand.u32 %s300, 1
        %s571 = scalar_lea.sflag [#allocation4], %s570
        %s572 = sand.u32 %s300, 1
        %s573 = smul.addr %s572, 8
        %s574 = scalar_lea.vmem [#allocation22], %s573
        %v576 = vld [vmem:[%s490] sm:$0xff]
        %v577 = vld [vmem:[#allocation5] sm:$0xff]
        %v578 = vadd.f32 %v576, %v577
        %v579 = vld [vmem:[#allocation7] sm:$0x1]
        %v580 = vld [vmem:[#allocation8] sm:$0x1]
        %vm581 = vcmask 261120
        %v582 = vsel %vm581, %v578, 0.0
        %583 = vadd.xlane.f32.xlu0 %v582
        %v584 = vpop.xlane.xlu0 %583
        %v585 = vrcp.pop 32.0
        %v586 = vmul.f32 %v584, %v585
        %v587 = vsub.f32 %v578, %v586
        %v588 = vmul.f32 %v587, %v587
        %v589 = vsel %vm581, %v588, 0.0
        %590 = vadd.xlane.f32.xlu0 %v589
        %v591 = vpop.xlane.xlu0 %590
        %v592 = vmul.f32 %v591, %v585
        %v593 = vadd.f32 %v592, 1e-06
        %v594 = vrsqrt.pop %v593
        %v595 = vmul.f32 %v587, %v594
        %v597 = vlaneseq
        %v598 = vshrl.u32 %v597, 7
        %v599 = vsub.s32 0, %v598
        %v600 = vrot.slane %v579, %v599
        %v602 = vmul.f32 %v595, %v600
        %v604 = vlaneseq
        %v605 = vshrl.u32 %v604, 7
        %v606 = vsub.s32 0, %v605
        %v607 = vrot.slane %v580, %v606
        %v609 = vadd.f32 %v602, %v607
        %v610 = vpack.c.bf16 %v609, %v609
        %v611 = vld [vmem:[#allocation10] sm:$0xf]
        %v612 = vld [vmem:[#allocation10 + $0x4] sm:$0xf]
        %v613 = vld [vmem:[#allocation10 + $0x8] sm:$0xf]
        %v614 = vld [vmem:[#allocation10 + $0xc] sm:$0xf]
        %v619 = vunpack.c.l.b16 %v611
        %v620 = vunpack.c.l.b16 %v612
        %v621 = vunpack.c.l.b16 %v613
        %v622 = vunpack.c.l.b16 %v614
        %v623 = vpack.c.b16 %v620, %v619
        %v624 = vpack.c.b16 %v622, %v621
        %v628 = vsel %vm581, %v610, 0
        %630 = vmatprep.subr.bf16.mxu0 0
        %631 = vmatpush1.bf16.msra.mxu0 %v623
        %632 = vmatprep.subr.bf16.mxu0 0
        %633 = vmatpush1.bf16.msra.mxu0 %v624
        %634 = vmatprep.subr.bf16.mxu0 0
        %635 = vmatpush1.bf16.msra.mxu0 0
        %636 = vmatprep.subr.bf16.mxu0 0
        %637 = vmatpush1.bf16.msra.mxu0 0
        %638 = vmatprep.subr.bf16.mxu0 0
        %639 = vmatpush1.bf16.msra.mxu0 0
        %640 = vmatprep.subr.bf16.mxu0 0
        %641 = vmatpush1.bf16.msra.mxu0 0
        %642 = vmatprep.subr.bf16.mxu0 0
        %643 = vmatpush1.bf16.msra.mxu0 0
        %644 = vmatprep.subr.bf16.mxu0 0
        %645 = vmatpush1.bf16.msra.mxu0 0
        %646 = vmatprep.subr.bf16.mxu0 0
        %647 = vmatpush1.bf16.msra.mxu0 0
        %648 = vmatprep.subr.bf16.mxu0 0
        %649 = vmatpush1.bf16.msra.mxu0 0
        %650 = vmatprep.subr.bf16.mxu0 0
        %651 = vmatpush1.bf16.msra.mxu0 0
        %652 = vmatprep.subr.bf16.mxu0 0
        %653 = vmatpush1.bf16.msra.mxu0 0
        %654 = vmatprep.subr.bf16.mxu0 0
        %655 = vmatpush1.bf16.msra.mxu0 0
        %656 = vmatprep.subr.bf16.mxu0 0
        %657 = vmatpush1.bf16.msra.mxu0 0
        %658 = vmatprep.subr.bf16.mxu0 0
        %659 = vmatpush1.bf16.msra.mxu0 0
        %660 = vmatprep.subr.bf16.mxu0 0
        %661 = vmatpush1.bf16.msra.mxu0 0
        %662 = vmatprep.mubr.bf16.mxu0 0
        %663 = vmatmul.mubr.bf16.gmra.mrb[0].mxu0 %v628
        %v664 = vpop.f32.mrb[0].mxu0
        %v665 = vadd.f32 0.0, %v664
        %v666 = vpop.f32.mrb[0].mxu0
        %v667 = vpop.f32.mrb[0].mxu0
        %v668 = vpop.f32.mrb[0].mxu0
        %669 = vdwg.mxu0
        %671 = vrot.lane.b32.xlu0 %v665, 120
        %v672 = vpop.permute.xlu0 %671
        %674 = vrot.lane.b32.xlu0 %v665, 112
        %v675 = vpop.permute.xlu0 %674
        %677 = vrot.lane.b32.xlu0 %v665, 104
        %v678 = vpop.permute.xlu0 %677
        %v680 = vcombine.low %v665, %v675
        %v681 = vcombine.high %v665, %v675
        %v683 = vunpack.c.l.s4 1983009808
        %v684 = vunpack.c.0.s8 %v683
        %v685 = vlaneseq
        %v686 = vshrl.u32 %v685, 7
        %v687 = vsub.s32 %v684, %v686
        %v688 = vrot.slane %v680, %v687
        %v690 = vunpack.c.l.s4 1983009808
        %v691 = vunpack.c.0.s8 %v690
        %v692 = vlaneseq
        %v693 = vshrl.u32 %v692, 7
        %v694 = vsub.s32 %v691, %v693
        %v695 = vrot.slane %v681, %v694
        %v696 = vcombine.low %v672, %v678
        %v697 = vcombine.high %v672, %v678
        %v699 = vunpack.c.l.s4 1983009808
        %v700 = vunpack.c.0.s8 %v699
        %v701 = vlaneseq
        %v702 = vshrl.u32 %v701, 7
        %v703 = vsub.s32 %v700, %v702
        %v704 = vrot.slane %v696, %v703
        %v706 = vunpack.c.l.s4 1983009808
        %v707 = vunpack.c.0.s8 %v706
        %v708 = vlaneseq
        %v709 = vshrl.u32 %v708, 7
        %v710 = vsub.s32 %v707, %v709
        %v711 = vrot.slane %v697, %v710
        %v712 = vcombine.low %v688, %v704
        %v713 = vcombine.high %v688, %v704
        %v715 = vunpack.c.l.s4 1934713408
        %v716 = vunpack.c.0.s8 %v715
        %v717 = vlaneseq
        %v718 = vshrl.u32 %v717, 7
        %v719 = vsub.s32 %v716, %v718
        %v720 = vrot.slane %v712, %v719
        %v722 = vunpack.c.l.s4 1934713408
        %v723 = vunpack.c.0.s8 %v722
        %v724 = vlaneseq
        %v725 = vshrl.u32 %v724, 7
        %v726 = vsub.s32 %v723, %v725
        %v727 = vrot.slane %v713, %v726
        %v728 = vcombine.low %v695, %v711
        %v729 = vcombine.high %v695, %v711
        %v731 = vunpack.c.l.s4 1934713408
        %v732 = vunpack.c.0.s8 %v731
        %v733 = vlaneseq
        %v734 = vshrl.u32 %v733, 7
        %v735 = vsub.s32 %v732, %v734
        %v736 = vrot.slane %v728, %v735
        %v738 = vunpack.c.l.s4 1934713408
        %v739 = vunpack.c.0.s8 %v738
        %v740 = vlaneseq
        %v741 = vshrl.u32 %v740, 7
        %v742 = vsub.s32 %v739, %v741
        %v743 = vrot.slane %v729, %v742
        %v744 = vcombine.high %v720, 0.0
        %v745 = vcombine.high %v727, 0.0
        %v746 = vcombine.high %v736, 0.0
        %v747 = vcombine.high %v743, 0.0
        %v748 = vcombine.low %v720, %v727
        %v750 = vunpack.c.l.s4 1983009808
        %v751 = vunpack.c.0.s8 %v750
        %v752 = vlaneseq
        %v753 = vshrl.u32 %v752, 7
        %v754 = vsub.s32 %v751, %v753
        %v755 = vrot.slane %v748, %v754
        %v756 = vcombine.low %v744, %v745
        %v758 = vunpack.c.l.s4 1983009808
        %v759 = vunpack.c.0.s8 %v758
        %v760 = vlaneseq
        %v761 = vshrl.u32 %v760, 7
        %v762 = vsub.s32 %v759, %v761
        %v763 = vrot.slane %v756, %v762
        %v764 = vcombine.low %v736, %v743
        %v766 = vunpack.c.l.s4 1983009808
        %v767 = vunpack.c.0.s8 %v766
        %v768 = vlaneseq
        %v769 = vshrl.u32 %v768, 7
        %v770 = vsub.s32 %v767, %v769
        %v771 = vrot.slane %v764, %v770
        %v772 = vcombine.low %v746, %v747
        %v774 = vunpack.c.l.s4 1983009808
        %v775 = vunpack.c.0.s8 %v774
        %v776 = vlaneseq
        %v777 = vshrl.u32 %v776, 7
        %v778 = vsub.s32 %v775, %v777
        %v779 = vrot.slane %v772, %v778
        %v780 = vcombine.low %v755, %v763
        %v781 = vcombine.high %v755, %v763
        %v783 = vunpack.c.l.s4 1934713408
        %v784 = vunpack.c.0.s8 %v783
        %v785 = vlaneseq
        %v786 = vshrl.u32 %v785, 7
        %v787 = vsub.s32 %v784, %v786
        %v788 = vrot.slane %v780, %v787
        %v790 = vunpack.c.l.s4 1934713408
        %v791 = vunpack.c.0.s8 %v790
        %v792 = vlaneseq
        %v793 = vshrl.u32 %v792, 7
        %v794 = vsub.s32 %v791, %v793
        %v795 = vrot.slane %v781, %v794
        %v796 = vcombine.low %v771, %v779
        %v797 = vcombine.high %v771, %v779
        %v799 = vunpack.c.l.s4 1934713408
        %v800 = vunpack.c.0.s8 %v799
        %v801 = vlaneseq
        %v802 = vshrl.u32 %v801, 7
        %v803 = vsub.s32 %v800, %v802
        %v804 = vrot.slane %v796, %v803
        %v806 = vunpack.c.l.s4 1934713408
        %v807 = vunpack.c.0.s8 %v806
        %v808 = vlaneseq
        %v809 = vshrl.u32 %v808, 7
        %v810 = vsub.s32 %v807, %v809
        %v811 = vrot.slane %v797, %v810
        %v812 = vcombine.low %v788, %v804
        %v813 = vcombine.high %v788, %v804
        %v814 = vcombine.low %v795, %v811
        %v815 = vcombine.high %v795, %v811
        %v816 = vpack.c.bf16 %v812, %v812
        %v817 = vpack.c.bf16 %v813, %v813
        %v818 = vpack.c.bf16 %v814, %v814
        %v819 = vpack.c.bf16 %v815, %v815
        %820 = vrot.lane.b32.xlu0 %v665, 96
        %v821 = vpop.permute.xlu0 %820
        %822 = vrot.lane.b32.xlu0 %v672, 96
        %v823 = vpop.permute.xlu0 %822
        %824 = vrot.lane.b32.xlu0 %v675, 96
        %v825 = vpop.permute.xlu0 %824
        %826 = vrot.lane.b32.xlu0 %v678, 96
        %v827 = vpop.permute.xlu0 %826
        %v832 = vcombine.low %v821, %v825
        %v833 = vcombine.high %v821, %v825
        %v835 = vunpack.c.l.s4 1983009808
        %v836 = vunpack.c.0.s8 %v835
        %v837 = vlaneseq
        %v838 = vshrl.u32 %v837, 7
        %v839 = vsub.s32 %v836, %v838
        %v840 = vrot.slane %v832, %v839
        %v842 = vunpack.c.l.s4 1983009808
        %v843 = vunpack.c.0.s8 %v842
        %v844 = vlaneseq
        %v845 = vshrl.u32 %v844, 7
        %v846 = vsub.s32 %v843, %v845
        %v847 = vrot.slane %v833, %v846
        %v848 = vcombine.low %v823, %v827
        %v849 = vcombine.high %v823, %v827
        %v851 = vunpack.c.l.s4 1983009808
        %v852 = vunpack.c.0.s8 %v851
        %v853 = vlaneseq
        %v854 = vshrl.u32 %v853, 7
        %v855 = vsub.s32 %v852, %v854
        %v856 = vrot.slane %v848, %v855
        %v858 = vunpack.c.l.s4 1983009808
        %v859 = vunpack.c.0.s8 %v858
        %v860 = vlaneseq
        %v861 = vshrl.u32 %v860, 7
        %v862 = vsub.s32 %v859, %v861
        %v863 = vrot.slane %v849, %v862
        %v864 = vcombine.low %v840, %v856
        %v865 = vcombine.high %v840, %v856
        %v867 = vunpack.c.l.s4 1934713408
        %v868 = vunpack.c.0.s8 %v867
        %v869 = vlaneseq
        %v870 = vshrl.u32 %v869, 7
        %v871 = vsub.s32 %v868, %v870
        %v872 = vrot.slane %v864, %v871
        %v874 = vunpack.c.l.s4 1934713408
        %v875 = vunpack.c.0.s8 %v874
        %v876 = vlaneseq
        %v877 = vshrl.u32 %v876, 7
        %v878 = vsub.s32 %v875, %v877
        %v879 = vrot.slane %v865, %v878
        %v880 = vcombine.low %v847, %v863
        %v881 = vcombine.high %v847, %v863
        %v883 = vunpack.c.l.s4 1934713408
        %v884 = vunpack.c.0.s8 %v883
        %v885 = vlaneseq
        %v886 = vshrl.u32 %v885, 7
        %v887 = vsub.s32 %v884, %v886
        %v888 = vrot.slane %v880, %v887
        %v890 = vunpack.c.l.s4 1934713408
        %v891 = vunpack.c.0.s8 %v890
        %v892 = vlaneseq
        %v893 = vshrl.u32 %v892, 7
        %v894 = vsub.s32 %v891, %v893
        %v895 = vrot.slane %v881, %v894
        %v896 = vcombine.high %v872, 0.0
        %v897 = vcombine.high %v879, 0.0
        %v898 = vcombine.high %v888, 0.0
        %v899 = vcombine.high %v895, 0.0
        %v900 = vcombine.low %v872, %v879
        %v902 = vunpack.c.l.s4 1983009808
        %v903 = vunpack.c.0.s8 %v902
        %v904 = vlaneseq
        %v905 = vshrl.u32 %v904, 7
        %v906 = vsub.s32 %v903, %v905
        %v907 = vrot.slane %v900, %v906
        %v908 = vcombine.low %v896, %v897
        %v910 = vunpack.c.l.s4 1983009808
        %v911 = vunpack.c.0.s8 %v910
        %v912 = vlaneseq
        %v913 = vshrl.u32 %v912, 7
        %v914 = vsub.s32 %v911, %v913
        %v915 = vrot.slane %v908, %v914
        %v916 = vcombine.low %v888, %v895
        %v918 = vunpack.c.l.s4 1983009808
        %v919 = vunpack.c.0.s8 %v918
        %v920 = vlaneseq
        %v921 = vshrl.u32 %v920, 7
        %v922 = vsub.s32 %v919, %v921
        %v923 = vrot.slane %v916, %v922
        %v924 = vcombine.low %v898, %v899
        %v926 = vunpack.c.l.s4 1983009808
        %v927 = vunpack.c.0.s8 %v926
        %v928 = vlaneseq
        %v929 = vshrl.u32 %v928, 7
        %v930 = vsub.s32 %v927, %v929
        %v931 = vrot.slane %v924, %v930
        %v932 = vcombine.low %v907, %v915
        %v933 = vcombine.high %v907, %v915
        %v935 = vunpack.c.l.s4 1934713408
        %v936 = vunpack.c.0.s8 %v935
        %v937 = vlaneseq
        %v938 = vshrl.u32 %v937, 7
        %v939 = vsub.s32 %v936, %v938
        %v940 = vrot.slane %v932, %v939
        %v942 = vunpack.c.l.s4 1934713408
        %v943 = vunpack.c.0.s8 %v942
        %v944 = vlaneseq
        %v945 = vshrl.u32 %v944, 7
        %v946 = vsub.s32 %v943, %v945
        %v947 = vrot.slane %v933, %v946
        %v948 = vcombine.low %v923, %v931
        %v949 = vcombine.high %v923, %v931
        %v951 = vunpack.c.l.s4 1934713408
        %v952 = vunpack.c.0.s8 %v951
        %v953 = vlaneseq
        %v954 = vshrl.u32 %v953, 7
        %v955 = vsub.s32 %v952, %v954
        %v956 = vrot.slane %v948, %v955
        %v958 = vunpack.c.l.s4 1934713408
        %v959 = vunpack.c.0.s8 %v958
        %v960 = vlaneseq
        %v961 = vshrl.u32 %v960, 7
        %v962 = vsub.s32 %v959, %v961
        %v963 = vrot.slane %v949, %v962
        %v964 = vcombine.low %v940, %v956
        %v965 = vcombine.high %v940, %v956
        %v966 = vcombine.low %v947, %v963
        %v967 = vcombine.high %v947, %v963
        %v968 = vpack.c.bf16 %v964, %v964
        %v969 = vpack.c.bf16 %v965, %v965
        %v970 = vpack.c.bf16 %v966, %v966
        %v971 = vpack.c.bf16 %v967, %v967
        %972 = vrot.lane.b32.xlu0 %v665, 64
        %v973 = vpop.permute.xlu0 %972
        %974 = vrot.lane.b32.xlu0 %v672, 64
        %v975 = vpop.permute.xlu0 %974
        %976 = vrot.lane.b32.xlu0 %v675, 64
        %v977 = vpop.permute.xlu0 %976
        %978 = vrot.lane.b32.xlu0 %v678, 64
        %v979 = vpop.permute.xlu0 %978
        %v984 = vcombine.low %v973, %v977
        %v985 = vcombine.high %v973, %v977
        %v987 = vunpack.c.l.s4 1983009808
        %v988 = vunpack.c.0.s8 %v987
        %v989 = vlaneseq
        %v990 = vshrl.u32 %v989, 7
        %v991 = vsub.s32 %v988, %v990
        %v992 = vrot.slane %v984, %v991
        %v994 = vunpack.c.l.s4 1983009808
        %v995 = vunpack.c.0.s8 %v994
        %v996 = vlaneseq
        %v997 = vshrl.u32 %v996, 7
        %v998 = vsub.s32 %v995, %v997
        %v999 = vrot.slane %v985, %v998
        %v1000 = vcombine.low %v975, %v979
        %v1001 = vcombine.high %v975, %v979
        %v1003 = vunpack.c.l.s4 1983009808
        %v1004 = vunpack.c.0.s8 %v1003
        %v1005 = vlaneseq
        %v1006 = vshrl.u32 %v1005, 7
        %v1007 = vsub.s32 %v1004, %v1006
        %v1008 = vrot.slane %v1000, %v1007
        %v1010 = vunpack.c.l.s4 1983009808
        %v1011 = vunpack.c.0.s8 %v1010
        %v1012 = vlaneseq
        %v1013 = vshrl.u32 %v1012, 7
        %v1014 = vsub.s32 %v1011, %v1013
        %v1015 = vrot.slane %v1001, %v1014
        %v1016 = vcombine.low %v992, %v1008
        %v1017 = vcombine.high %v992, %v1008
        %v1019 = vunpack.c.l.s4 1934713408
        %v1020 = vunpack.c.0.s8 %v1019
        %v1021 = vlaneseq
        %v1022 = vshrl.u32 %v1021, 7
        %v1023 = vsub.s32 %v1020, %v1022
        %v1024 = vrot.slane %v1016, %v1023
        %v1026 = vunpack.c.l.s4 1934713408
        %v1027 = vunpack.c.0.s8 %v1026
        %v1028 = vlaneseq
        %v1029 = vshrl.u32 %v1028, 7
        %v1030 = vsub.s32 %v1027, %v1029
        %v1031 = vrot.slane %v1017, %v1030
        %v1032 = vcombine.low %v999, %v1015
        %v1033 = vcombine.high %v999, %v1015
        %v1035 = vunpack.c.l.s4 1934713408
        %v1036 = vunpack.c.0.s8 %v1035
        %v1037 = vlaneseq
        %v1038 = vshrl.u32 %v1037, 7
        %v1039 = vsub.s32 %v1036, %v1038
        %v1040 = vrot.slane %v1032, %v1039
        %v1042 = vunpack.c.l.s4 1934713408
        %v1043 = vunpack.c.0.s8 %v1042
        %v1044 = vlaneseq
        %v1045 = vshrl.u32 %v1044, 7
        %v1046 = vsub.s32 %v1043, %v1045
        %v1047 = vrot.slane %v1033, %v1046
        %v1048 = vcombine.high %v1024, 0.0
        %v1049 = vcombine.high %v1031, 0.0
        %v1050 = vcombine.high %v1040, 0.0
        %v1051 = vcombine.high %v1047, 0.0
        %v1052 = vcombine.low %v1024, %v1031
        %v1054 = vunpack.c.l.s4 1983009808
        %v1055 = vunpack.c.0.s8 %v1054
        %v1056 = vlaneseq
        %v1057 = vshrl.u32 %v1056, 7
        %v1058 = vsub.s32 %v1055, %v1057
        %v1059 = vrot.slane %v1052, %v1058
        %v1060 = vcombine.low %v1048, %v1049
        %v1062 = vunpack.c.l.s4 1983009808
        %v1063 = vunpack.c.0.s8 %v1062
        %v1064 = vlaneseq
        %v1065 = vshrl.u32 %v1064, 7
        %v1066 = vsub.s32 %v1063, %v1065
        %v1067 = vrot.slane %v1060, %v1066
        %v1068 = vcombine.low %v1040, %v1047
        %v1070 = vunpack.c.l.s4 1983009808
        %v1071 = vunpack.c.0.s8 %v1070
        %v1072 = vlaneseq
        %v1073 = vshrl.u32 %v1072, 7
        %v1074 = vsub.s32 %v1071, %v1073
        %v1075 = vrot.slane %v1068, %v1074
        %v1076 = vcombine.low %v1050, %v1051
        %v1078 = vunpack.c.l.s4 1983009808
        %v1079 = vunpack.c.0.s8 %v1078
        %v1080 = vlaneseq
        %v1081 = vshrl.u32 %v1080, 7
        %v1082 = vsub.s32 %v1079, %v1081
        %v1083 = vrot.slane %v1076, %v1082
        %v1084 = vcombine.low %v1059, %v1067
        %v1085 = vcombine.high %v1059, %v1067
        %v1087 = vunpack.c.l.s4 1934713408
        %v1088 = vunpack.c.0.s8 %v1087
        %v1089 = vlaneseq
        %v1090 = vshrl.u32 %v1089, 7
        %v1091 = vsub.s32 %v1088, %v1090
        %v1092 = vrot.slane %v1084, %v1091
        %v1094 = vunpack.c.l.s4 1934713408
        %v1095 = vunpack.c.0.s8 %v1094
        %v1096 = vlaneseq
        %v1097 = vshrl.u32 %v1096, 7
        %v1098 = vsub.s32 %v1095, %v1097
        %v1099 = vrot.slane %v1085, %v1098
        %v1100 = vcombine.low %v1075, %v1083
        %v1101 = vcombine.high %v1075, %v1083
        %v1103 = vunpack.c.l.s4 1934713408
        %v1104 = vunpack.c.0.s8 %v1103
        %v1105 = vlaneseq
        %v1106 = vshrl.u32 %v1105, 7
        %v1107 = vsub.s32 %v1104, %v1106
        %v1108 = vrot.slane %v1100, %v1107
        %v1110 = vunpack.c.l.s4 1934713408
        %v1111 = vunpack.c.0.s8 %v1110
        %v1112 = vlaneseq
        %v1113 = vshrl.u32 %v1112, 7
        %v1114 = vsub.s32 %v1111, %v1113
        %v1115 = vrot.slane %v1101, %v1114
        %v1116 = vcombine.low %v1092, %v1108
        %v1117 = vcombine.high %v1092, %v1108
        %v1118 = vcombine.low %v1099, %v1115
        %v1119 = vcombine.high %v1099, %v1115
        %v1120 = vpack.c.bf16 %v1116, %v1116
        %v1121 = vpack.c.bf16 %v1117, %v1117
        %v1122 = vpack.c.bf16 %v1118, %v1118
        %v1123 = vpack.c.bf16 %v1119, %v1119
        %v1124 = vlaneseq
        %v1125 = vshrl.u32 %v1124, 7
        %v1126 = vlaneseq
        %v1127 = vand.u32 %v1126, 127
        %vm1128 = vcmp.gt.s32.totalorder %v1127, %v1125
        %v1129 = vsel %vm1128, -1e+09, 0.0
        %vm1130 = vcmask 64512
        %v1132 = vsel %vm1130, %v816, 0
        %v1135 = vsel %vm1130, %v968, 0
        %1137 = vmatprep.subr.bf16.mxu0 0
        %1138 = vmatpush1.bf16.xpose.msra.mxu0 %v1135
        %1139 = vmatprep.subr.bf16.mxu0 0
        %1140 = vmatpush1.bf16.xpose.msra.mxu0 0
        %1141 = vmatprep.subr.bf16.mxu0 0
        %1142 = vmatpush1.bf16.xpose.msra.mxu0 0
        %1143 = vmatprep.subr.bf16.mxu0 0
        %1144 = vmatpush1.bf16.xpose.msra.mxu0 0
        %1145 = vmatprep.subr.bf16.mxu0 0
        %1146 = vmatpush1.bf16.xpose.msra.mxu0 0
        %1147 = vmatprep.subr.bf16.mxu0 0
        %1148 = vmatpush1.bf16.xpose.msra.mxu0 0
        %1149 = vmatprep.subr.bf16.mxu0 0
        %1150 = vmatpush1.bf16.xpose.msra.mxu0 0
        %1151 = vmatprep.subr.bf16.mxu0 0
        %1152 = vmatpush1.bf16.xpose.msra.mxu0 0
        %1153 = vmatprep.subr.bf16.mxu0 0
        %1154 = vmatpush1.bf16.xpose.msra.mxu0 0
        %1155 = vmatprep.subr.bf16.mxu0 0
        %1156 = vmatpush1.bf16.xpose.msra.mxu0 0
        %1157 = vmatprep.subr.bf16.mxu0 0
        %1158 = vmatpush1.bf16.xpose.msra.mxu0 0
        %1159 = vmatprep.subr.bf16.mxu0 0
        %1160 = vmatpush1.bf16.xpose.msra.mxu0 0
        %1161 = vmatprep.subr.bf16.mxu0 0
        %1162 = vmatpush1.bf16.xpose.msra.mxu0 0
        %1163 = vmatprep.subr.bf16.mxu0 0
        %1164 = vmatpush1.bf16.xpose.msra.mxu0 0
        %1165 = vmatprep.subr.bf16.mxu0 0
        %1166 = vmatpush1.bf16.xpose.msra.mxu0 0
        %1167 = vmatprep.subr.bf16.mxu0 0
        %1168 = vmatpush1.bf16.xpose.msra.mxu0 0
        %1169 = vmatprep.mubr.bf16.mxu0 0
        %1170 = vmatmul.mubr.bf16.gmra.mrb[0].mxu0 %v1132
        %v1171 = vpop.f32.mrb[0].mxu0
        %v1172 = vadd.f32 %v1129, %v1171
        %v1173 = vpop.f32.mrb[0].mxu0
        %v1174 = vpop.f32.mrb[0].mxu0
        %v1175 = vpop.f32.mrb[0].mxu0
        %1176 = vdwg.mxu0
        %v1178 = vsel %vm1130, %v817, 0
        %v1181 = vsel %vm1130, %v969, 0
        %1183 = vmatprep.subr.bf16.mxu0 0
        %1184 = vmatpush1.bf16.xpose.msra.mxu0 %v1181
        %1185 = vmatprep.subr.bf16.mxu0 0
        %1186 = vmatpush1.bf16.xpose.msra.mxu0 0
        %1187 = vmatprep.subr.bf16.mxu0 0
        %1188 = vmatpush1.bf16.xpose.msra.mxu0 0
        %1189 = vmatprep.subr.bf16.mxu0 0
        %1190 = vmatpush1.bf16.xpose.msra.mxu0 0
        %1191 = vmatprep.subr.bf16.mxu0 0
        %1192 = vmatpush1.bf16.xpose.msra.mxu0 0
        %1193 = vmatprep.subr.bf16.mxu0 0
        %1194 = vmatpush1.bf16.xpose.msra.mxu0 0
        %1195 = vmatprep.subr.bf16.mxu0 0
        %1196 = vmatpush1.bf16.xpose.msra.mxu0 0
        %1197 = vmatprep.subr.bf16.mxu0 0
        %1198 = vmatpush1.bf16.xpose.msra.mxu0 0
        %1199 = vmatprep.subr.bf16.mxu0 0
        %1200 = vmatpush1.bf16.xpose.msra.mxu0 0
        %1201 = vmatprep.subr.bf16.mxu0 0
        %1202 = vmatpush1.bf16.xpose.msra.mxu0 0
        %1203 = vmatprep.subr.bf16.mxu0 0
        %1204 = vmatpush1.bf16.xpose.msra.mxu0 0
        %1205 = vmatprep.subr.bf16.mxu0 0
        %1206 = vmatpush1.bf16.xpose.msra.mxu0 0
        %1207 = vmatprep.subr.bf16.mxu0 0
        %1208 = vmatpush1.bf16.xpose.msra.mxu0 0
        %1209 = vmatprep.subr.bf16.mxu0 0
        %1210 = vmatpush1.bf16.xpose.msra.mxu0 0
        %1211 = vmatprep.subr.bf16.mxu0 0
        %1212 = vmatpush1.bf16.xpose.msra.mxu0 0
        %1213 = vmatprep.subr.bf16.mxu0 0
        %1214 = vmatpush1.bf16.xpose.msra.mxu0 0
        %1215 = vmatprep.mubr.bf16.mxu0 0
        %1216 = vmatmul.mubr.bf16.gmra.mrb[0].mxu0 %v1178
        %v1217 = vpop.f32.mrb[0].mxu0
        %v1218 = vadd.f32 %v1129, %v1217
        %v1219 = vpop.f32.mrb[0].mxu0
        %v1220 = vpop.f32.mrb[0].mxu0
        %v1221 = vpop.f32.mrb[0].mxu0
        %1222 = vdwg.mxu0
        %v1224 = vsel %vm1130, %v818, 0
        %v1227 = vsel %vm1130, %v970, 0
        %1229 = vmatprep.subr.bf16.mxu0 0
        %1230 = vmatpush1.bf16.xpose.msra.mxu0 %v1227
        %1231 = vmatprep.subr.bf16.mxu0 0
        %1232 = vmatpush1.bf16.xpose.msra.mxu0 0
        %1233 = vmatprep.subr.bf16.mxu0 0
        %1234 = vmatpush1.bf16.xpose.msra.mxu0 0
        %1235 = vmatprep.subr.bf16.mxu0 0
        %1236 = vmatpush1.bf16.xpose.msra.mxu0 0
        %1237 = vmatprep.subr.bf16.mxu0 0
        %1238 = vmatpush1.bf16.xpose.msra.mxu0 0
        %1239 = vmatprep.subr.bf16.mxu0 0
        %1240 = vmatpush1.bf16.xpose.msra.mxu0 0
        %1241 = vmatprep.subr.bf16.mxu0 0
        %1242 = vmatpush1.bf16.xpose.msra.mxu0 0
        %1243 = vmatprep.subr.bf16.mxu0 0
        %1244 = vmatpush1.bf16.xpose.msra.mxu0 0
        %1245 = vmatprep.subr.bf16.mxu0 0
        %1246 = vmatpush1.bf16.xpose.msra.mxu0 0
        %1247 = vmatprep.subr.bf16.mxu0 0
        %1248 = vmatpush1.bf16.xpose.msra.mxu0 0
        %1249 = vmatprep.subr.bf16.mxu0 0
        %1250 = vmatpush1.bf16.xpose.msra.mxu0 0
        %1251 = vmatprep.subr.bf16.mxu0 0
        %1252 = vmatpush1.bf16.xpose.msra.mxu0 0
        %1253 = vmatprep.subr.bf16.mxu0 0
        %1254 = vmatpush1.bf16.xpose.msra.mxu0 0
        %1255 = vmatprep.subr.bf16.mxu0 0
        %1256 = vmatpush1.bf16.xpose.msra.mxu0 0
        %1257 = vmatprep.subr.bf16.mxu0 0
        %1258 = vmatpush1.bf16.xpose.msra.mxu0 0
        %1259 = vmatprep.subr.bf16.mxu0 0
        %1260 = vmatpush1.bf16.xpose.msra.mxu0 0
        %1261 = vmatprep.mubr.bf16.mxu0 0
        %1262 = vmatmul.mubr.bf16.gmra.mrb[0].mxu0 %v1224
        %v1263 = vpop.f32.mrb[0].mxu0
        %v1264 = vadd.f32 %v1129, %v1263
        %v1265 = vpop.f32.mrb[0].mxu0
        %v1266 = vpop.f32.mrb[0].mxu0
        %v1267 = vpop.f32.mrb[0].mxu0
        %1268 = vdwg.mxu0
        %v1270 = vsel %vm1130, %v819, 0
        %v1273 = vsel %vm1130, %v971, 0
        %1275 = vmatprep.subr.bf16.mxu0 0
        %1276 = vmatpush1.bf16.xpose.msra.mxu0 %v1273
        %1277 = vmatprep.subr.bf16.mxu0 0
        %1278 = vmatpush1.bf16.xpose.msra.mxu0 0
        %1279 = vmatprep.subr.bf16.mxu0 0
        %1280 = vmatpush1.bf16.xpose.msra.mxu0 0
        %1281 = vmatprep.subr.bf16.mxu0 0
        %1282 = vmatpush1.bf16.xpose.msra.mxu0 0
        %1283 = vmatprep.subr.bf16.mxu0 0
        %1284 = vmatpush1.bf16.xpose.msra.mxu0 0
        %1285 = vmatprep.subr.bf16.mxu0 0
        %1286 = vmatpush1.bf16.xpose.msra.mxu0 0
        %1287 = vmatprep.subr.bf16.mxu0 0
        %1288 = vmatpush1.bf16.xpose.msra.mxu0 0
        %1289 = vmatprep.subr.bf16.mxu0 0
        %1290 = vmatpush1.bf16.xpose.msra.mxu0 0
        %1291 = vmatprep.subr.bf16.mxu0 0
        %1292 = vmatpush1.bf16.xpose.msra.mxu0 0
        %1293 = vmatprep.subr.bf16.mxu0 0
        %1294 = vmatpush1.bf16.xpose.msra.mxu0 0
        %1295 = vmatprep.subr.bf16.mxu0 0
        %1296 = vmatpush1.bf16.xpose.msra.mxu0 0
        %1297 = vmatprep.subr.bf16.mxu0 0
        %1298 = vmatpush1.bf16.xpose.msra.mxu0 0
        %1299 = vmatprep.subr.bf16.mxu0 0
        %1300 = vmatpush1.bf16.xpose.msra.mxu0 0
        %1301 = vmatprep.subr.bf16.mxu0 0
        %1302 = vmatpush1.bf16.xpose.msra.mxu0 0
        %1303 = vmatprep.subr.bf16.mxu0 0
        %1304 = vmatpush1.bf16.xpose.msra.mxu0 0
        %1305 = vmatprep.subr.bf16.mxu0 0
        %1306 = vmatpush1.bf16.xpose.msra.mxu0 0
        %1307 = vmatprep.mubr.bf16.mxu0 0
        %1308 = vmatmul.mubr.bf16.gmra.mrb[0].mxu0 %v1270
        %v1309 = vpop.f32.mrb[0].mxu0
        %v1310 = vadd.f32 %v1129, %v1309
        %v1311 = vpop.f32.mrb[0].mxu0
        %v1312 = vpop.f32.mrb[0].mxu0
        %v1313 = vpop.f32.mrb[0].mxu0
        %1314 = vdwg.mxu0
        %v1315 = vsel %vm1130, %v1172, -inf
        %1316 = vmax.xlane.f32.xlu0 %v1315
        %v1317 = vpop.xlane.xlu0 %1316
        %v1318 = vsel %vm1130, %v1218, -inf
        %1319 = vmax.xlane.f32.xlu0 %v1318
        %v1320 = vpop.xlane.xlu0 %1319
        %v1321 = vsel %vm1130, %v1264, -inf
        %1322 = vmax.xlane.f32.xlu0 %v1321
        %v1323 = vpop.xlane.xlu0 %1322
        %v1324 = vsel %vm1130, %v1310, -inf
        %1325 = vmax.xlane.f32.xlu0 %v1324
        %v1326 = vpop.xlane.xlu0 %1325
        %v1327 = vsub.f32 %v1172, %v1317
        %v1328 = vsub.f32 %v1218, %v1320
        %v1329 = vsub.f32 %v1264, %v1323
        %v1330 = vsub.f32 %v1310, %v1326
        %v1331 = vmul.f32 %v1327, 1.442695
        %v1332 = vpow.pop %v1331
        %v1333 = vmul.f32 %v1328, 1.442695
        %v1334 = vpow.pop %v1333
        %v1335 = vmul.f32 %v1329, 1.442695
        %v1336 = vpow.pop %v1335
        %v1337 = vmul.f32 %v1330, 1.442695
        %v1338 = vpow.pop %v1337
        %v1339 = vsel %vm1130, %v1332, 0.0
        %1340 = vadd.xlane.f32.xlu0 %v1339
        %v1341 = vpop.xlane.xlu0 %1340
        %v1342 = vsel %vm1130, %v1334, 0.0
        %1343 = vadd.xlane.f32.xlu0 %v1342
        %v1344 = vpop.xlane.xlu0 %1343
        %v1345 = vsel %vm1130, %v1336, 0.0
        %1346 = vadd.xlane.f32.xlu0 %v1345
        %v1347 = vpop.xlane.xlu0 %1346
        %v1348 = vsel %vm1130, %v1338, 0.0
        %1349 = vadd.xlane.f32.xlu0 %v1348
        %v1350 = vpop.xlane.xlu0 %1349
        %v1351 = vrcp.pop %v1341
        %v1352 = vmul.f32 %v1332, %v1351
        %v1353 = vrcp.pop %v1344
        %v1354 = vmul.f32 %v1334, %v1353
        %v1355 = vrcp.pop %v1347
        %v1356 = vmul.f32 %v1336, %v1355
        %v1357 = vrcp.pop %v1350
        %v1358 = vmul.f32 %v1338, %v1357
        %v1359 = vpack.c.bf16 %v1352, %v1352
        %v1360 = vpack.c.bf16 %v1354, %v1354
        %v1361 = vpack.c.bf16 %v1356, %v1356
        %v1362 = vpack.c.bf16 %v1358, %v1358
        %v1364 = vsel %vm1130, %v1359, 0
        %vm1366 = vcmask 1043456
        %v1368 = vsel %vm1366, %v1120, 0
        %1370 = vmatprep.subr.bf16.mxu0 0
        %1371 = vmatpush1.bf16.msra.mxu0 %v1368
        %1372 = vmatprep.subr.bf16.mxu0 0
        %1373 = vmatpush1.bf16.msra.mxu0 0
        %1374 = vmatprep.subr.bf16.mxu0 0
        %1375 = vmatpush1.bf16.msra.mxu0 0
        %1376 = vmatprep.subr.bf16.mxu0 0
        %1377 = vmatpush1.bf16.msra.mxu0 0
        %1378 = vmatprep.subr.bf16.mxu0 0
        %1379 = vmatpush1.bf16.msra.mxu0 0
        %1380 = vmatprep.subr.bf16.mxu0 0
        %1381 = vmatpush1.bf16.msra.mxu0 0
        %1382 = vmatprep.subr.bf16.mxu0 0
        %1383 = vmatpush1.bf16.msra.mxu0 0
        %1384 = vmatprep.subr.bf16.mxu0 0
        %1385 = vmatpush1.bf16.msra.mxu0 0
        %1386 = vmatprep.subr.bf16.mxu0 0
        %1387 = vmatpush1.bf16.msra.mxu0 0
        %1388 = vmatprep.subr.bf16.mxu0 0
        %1389 = vmatpush1.bf16.msra.mxu0 0
        %1390 = vmatprep.subr.bf16.mxu0 0
        %1391 = vmatpush1.bf16.msra.mxu0 0
        %1392 = vmatprep.subr.bf16.mxu0 0
        %1393 = vmatpush1.bf16.msra.mxu0 0
        %1394 = vmatprep.subr.bf16.mxu0 0
        %1395 = vmatpush1.bf16.msra.mxu0 0
        %1396 = vmatprep.subr.bf16.mxu0 0
        %1397 = vmatpush1.bf16.msra.mxu0 0
        %1398 = vmatprep.subr.bf16.mxu0 0
        %1399 = vmatpush1.bf16.msra.mxu0 0
        %1400 = vmatprep.subr.bf16.mxu0 0
        %1401 = vmatpush1.bf16.msra.mxu0 0
        %1402 = vmatprep.mubr.bf16.mxu0 0
        %1403 = vmatmul.mubr.bf16.gmra.mrb[0].mxu0 %v1364
        %v1404 = vpop.f32.mrb[0].mxu0
        %v1405 = vadd.f32 0.0, %v1404
        %v1406 = vpop.f32.mrb[0].mxu0
        %v1407 = vpop.f32.mrb[0].mxu0
        %v1408 = vpop.f32.mrb[0].mxu0
        %1409 = vdwg.mxu0
        %v1411 = vsel %vm1130, %v1360, 0
        %v1414 = vsel %vm1366, %v1121, 0
        %1416 = vmatprep.subr.bf16.mxu0 0
        %1417 = vmatpush1.bf16.msra.mxu0 %v1414
        %1418 = vmatprep.subr.bf16.mxu0 0
        %1419 = vmatpush1.bf16.msra.mxu0 0
        %1420 = vmatprep.subr.bf16.mxu0 0
        %1421 = vmatpush1.bf16.msra.mxu0 0
        %1422 = vmatprep.subr.bf16.mxu0 0
        %1423 = vmatpush1.bf16.msra.mxu0 0
        %1424 = vmatprep.subr.bf16.mxu0 0
        %1425 = vmatpush1.bf16.msra.mxu0 0
        %1426 = vmatprep.subr.bf16.mxu0 0
        %1427 = vmatpush1.bf16.msra.mxu0 0
        %1428 = vmatprep.subr.bf16.mxu0 0
        %1429 = vmatpush1.bf16.msra.mxu0 0
        %1430 = vmatprep.subr.bf16.mxu0 0
        %1431 = vmatpush1.bf16.msra.mxu0 0
        %1432 = vmatprep.subr.bf16.mxu0 0
        %1433 = vmatpush1.bf16.msra.mxu0 0
        %1434 = vmatprep.subr.bf16.mxu0 0
        %1435 = vmatpush1.bf16.msra.mxu0 0
        %1436 = vmatprep.subr.bf16.mxu0 0
        %1437 = vmatpush1.bf16.msra.mxu0 0
        %1438 = vmatprep.subr.bf16.mxu0 0
        %1439 = vmatpush1.bf16.msra.mxu0 0
        %1440 = vmatprep.subr.bf16.mxu0 0
        %1441 = vmatpush1.bf16.msra.mxu0 0
        %1442 = vmatprep.subr.bf16.mxu0 0
        %1443 = vmatpush1.bf16.msra.mxu0 0
        %1444 = vmatprep.subr.bf16.mxu0 0
        %1445 = vmatpush1.bf16.msra.mxu0 0
        %1446 = vmatprep.subr.bf16.mxu0 0
        %1447 = vmatpush1.bf16.msra.mxu0 0
        %1448 = vmatprep.mubr.bf16.mxu0 0
        %1449 = vmatmul.mubr.bf16.gmra.mrb[0].mxu0 %v1411
        %v1450 = vpop.f32.mrb[0].mxu0
        %v1451 = vadd.f32 0.0, %v1450
        %v1452 = vpop.f32.mrb[0].mxu0
        %v1453 = vpop.f32.mrb[0].mxu0
        %v1454 = vpop.f32.mrb[0].mxu0
        %1455 = vdwg.mxu0
        %v1457 = vsel %vm1130, %v1361, 0
        %v1460 = vsel %vm1366, %v1122, 0
        %1462 = vmatprep.subr.bf16.mxu0 0
        %1463 = vmatpush1.bf16.msra.mxu0 %v1460
        %1464 = vmatprep.subr.bf16.mxu0 0
        %1465 = vmatpush1.bf16.msra.mxu0 0
        %1466 = vmatprep.subr.bf16.mxu0 0
        %1467 = vmatpush1.bf16.msra.mxu0 0
        %1468 = vmatprep.subr.bf16.mxu0 0
        %1469 = vmatpush1.bf16.msra.mxu0 0
        %1470 = vmatprep.subr.bf16.mxu0 0
        %1471 = vmatpush1.bf16.msra.mxu0 0
        %1472 = vmatprep.subr.bf16.mxu0 0
        %1473 = vmatpush1.bf16.msra.mxu0 0
        %1474 = vmatprep.subr.bf16.mxu0 0
        %1475 = vmatpush1.bf16.msra.mxu0 0
        %1476 = vmatprep.subr.bf16.mxu0 0
        %1477 = vmatpush1.bf16.msra.mxu0 0
        %1478 = vmatprep.subr.bf16.mxu0 0
        %1479 = vmatpush1.bf16.msra.mxu0 0
        %1480 = vmatprep.subr.bf16.mxu0 0
        %1481 = vmatpush1.bf16.msra.mxu0 0
        %1482 = vmatprep.subr.bf16.mxu0 0
        %1483 = vmatpush1.bf16.msra.mxu0 0
        %1484 = vmatprep.subr.bf16.mxu0 0
        %1485 = vmatpush1.bf16.msra.mxu0 0
        %1486 = vmatprep.subr.bf16.mxu0 0
        %1487 = vmatpush1.bf16.msra.mxu0 0
        %1488 = vmatprep.subr.bf16.mxu0 0
        %1489 = vmatpush1.bf16.msra.mxu0 0
        %1490 = vmatprep.subr.bf16.mxu0 0
        %1491 = vmatpush1.bf16.msra.mxu0 0
        %1492 = vmatprep.subr.bf16.mxu0 0
        %1493 = vmatpush1.bf16.msra.mxu0 0
        %1494 = vmatprep.mubr.bf16.mxu0 0
        %1495 = vmatmul.mubr.bf16.gmra.mrb[0].mxu0 %v1457
        %v1496 = vpop.f32.mrb[0].mxu0
        %v1497 = vadd.f32 0.0, %v1496
        %v1498 = vpop.f32.mrb[0].mxu0
        %v1499 = vpop.f32.mrb[0].mxu0
        %v1500 = vpop.f32.mrb[0].mxu0
        %1501 = vdwg.mxu0
        %v1503 = vsel %vm1130, %v1362, 0
        %v1506 = vsel %vm1366, %v1123, 0
        %1508 = vmatprep.subr.bf16.mxu0 0
        %1509 = vmatpush1.bf16.msra.mxu0 %v1506
        %1510 = vmatprep.subr.bf16.mxu0 0
        %1511 = vmatpush1.bf16.msra.mxu0 0
        %1512 = vmatprep.subr.bf16.mxu0 0
        %1513 = vmatpush1.bf16.msra.mxu0 0
        %1514 = vmatprep.subr.bf16.mxu0 0
        %1515 = vmatpush1.bf16.msra.mxu0 0
        %1516 = vmatprep.subr.bf16.mxu0 0
        %1517 = vmatpush1.bf16.msra.mxu0 0
        %1518 = vmatprep.subr.bf16.mxu0 0
        %1519 = vmatpush1.bf16.msra.mxu0 0
        %1520 = vmatprep.subr.bf16.mxu0 0
        %1521 = vmatpush1.bf16.msra.mxu0 0
        %1522 = vmatprep.subr.bf16.mxu0 0
        %1523 = vmatpush1.bf16.msra.mxu0 0
        %1524 = vmatprep.subr.bf16.mxu0 0
        %1525 = vmatpush1.bf16.msra.mxu0 0
        %1526 = vmatprep.subr.bf16.mxu0 0
        %1527 = vmatpush1.bf16.msra.mxu0 0
        %1528 = vmatprep.subr.bf16.mxu0 0
        %1529 = vmatpush1.bf16.msra.mxu0 0
        %1530 = vmatprep.subr.bf16.mxu0 0
        %1531 = vmatpush1.bf16.msra.mxu0 0
        %1532 = vmatprep.subr.bf16.mxu0 0
        %1533 = vmatpush1.bf16.msra.mxu0 0
        %1534 = vmatprep.subr.bf16.mxu0 0
        %1535 = vmatpush1.bf16.msra.mxu0 0
        %1536 = vmatprep.subr.bf16.mxu0 0
        %1537 = vmatpush1.bf16.msra.mxu0 0
        %1538 = vmatprep.subr.bf16.mxu0 0
        %1539 = vmatpush1.bf16.msra.mxu0 0
        %1540 = vmatprep.mubr.bf16.mxu0 0
        %1541 = vmatmul.mubr.bf16.gmra.mrb[0].mxu0 %v1503
        %v1542 = vpop.f32.mrb[0].mxu0
        %v1543 = vadd.f32 0.0, %v1542
        %v1544 = vpop.f32.mrb[0].mxu0
        %v1545 = vpop.f32.mrb[0].mxu0
        %v1546 = vpop.f32.mrb[0].mxu0
        %1547 = vdwg.mxu0
        %v1548 = vcombine.low %v1405, %v1497
        %v1549 = vcombine.high %v1405, %v1497
        %v1551 = vunpack.c.l.s4 1983009808
        %v1552 = vunpack.c.0.s8 %v1551
        %v1553 = vlaneseq
        %v1554 = vshrl.u32 %v1553, 7
        %v1555 = vsub.s32 %v1552, %v1554
        %v1556 = vrot.slane %v1548, %v1555
        %v1558 = vunpack.c.l.s4 1983009808
        %v1559 = vunpack.c.0.s8 %v1558
        %v1560 = vlaneseq
        %v1561 = vshrl.u32 %v1560, 7
        %v1562 = vsub.s32 %v1559, %v1561
        %v1563 = vrot.slane %v1549, %v1562
        %v1564 = vcombine.low %v1451, %v1543
        %v1565 = vcombine.high %v1451, %v1543
        %v1567 = vunpack.c.l.s4 1983009808
        %v1568 = vunpack.c.0.s8 %v1567
        %v1569 = vlaneseq
        %v1570 = vshrl.u32 %v1569, 7
        %v1571 = vsub.s32 %v1568, %v1570
        %v1572 = vrot.slane %v1564, %v1571
        %v1574 = vunpack.c.l.s4 1983009808
        %v1575 = vunpack.c.0.s8 %v1574
        %v1576 = vlaneseq
        %v1577 = vshrl.u32 %v1576, 7
        %v1578 = vsub.s32 %v1575, %v1577
        %v1579 = vrot.slane %v1565, %v1578
        %v1580 = vcombine.low %v1556, %v1572
        %v1581 = vcombine.high %v1556, %v1572
        %v1583 = vunpack.c.l.s4 1934713408
        %v1584 = vunpack.c.0.s8 %v1583
        %v1585 = vlaneseq
        %v1586 = vshrl.u32 %v1585, 7
        %v1587 = vsub.s32 %v1584, %v1586
        %v1588 = vrot.slane %v1580, %v1587
        %v1590 = vunpack.c.l.s4 1934713408
        %v1591 = vunpack.c.0.s8 %v1590
        %v1592 = vlaneseq
        %v1593 = vshrl.u32 %v1592, 7
        %v1594 = vsub.s32 %v1591, %v1593
        %v1595 = vrot.slane %v1581, %v1594
        %v1596 = vcombine.low %v1563, %v1579
        %v1597 = vcombine.high %v1563, %v1579
        %v1599 = vunpack.c.l.s4 1934713408
        %v1600 = vunpack.c.0.s8 %v1599
        %v1601 = vlaneseq
        %v1602 = vshrl.u32 %v1601, 7
        %v1603 = vsub.s32 %v1600, %v1602
        %v1604 = vrot.slane %v1596, %v1603
        %v1606 = vunpack.c.l.s4 1934713408
        %v1607 = vunpack.c.0.s8 %v1606
        %v1608 = vlaneseq
        %v1609 = vshrl.u32 %v1608, 7
        %v1610 = vsub.s32 %v1607, %v1609
        %v1611 = vrot.slane %v1597, %v1610
        %v1612 = vcombine.high %v1588, 0.0
        %v1613 = vcombine.high %v1595, 0.0
        %v1614 = vcombine.high %v1604, 0.0
        %v1615 = vcombine.high %v1611, 0.0
        %v1616 = vcombine.low %v1588, %v1595
        %v1618 = vunpack.c.l.s4 1983009808
        %v1619 = vunpack.c.0.s8 %v1618
        %v1620 = vlaneseq
        %v1621 = vshrl.u32 %v1620, 7
        %v1622 = vsub.s32 %v1619, %v1621
        %v1623 = vrot.slane %v1616, %v1622
        %v1624 = vcombine.low %v1612, %v1613
        %v1626 = vunpack.c.l.s4 1983009808
        %v1627 = vunpack.c.0.s8 %v1626
        %v1628 = vlaneseq
        %v1629 = vshrl.u32 %v1628, 7
        %v1630 = vsub.s32 %v1627, %v1629
        %v1631 = vrot.slane %v1624, %v1630
        %v1632 = vcombine.low %v1604, %v1611
        %v1634 = vunpack.c.l.s4 1983009808
        %v1635 = vunpack.c.0.s8 %v1634
        %v1636 = vlaneseq
        %v1637 = vshrl.u32 %v1636, 7
        %v1638 = vsub.s32 %v1635, %v1637
        %v1639 = vrot.slane %v1632, %v1638
        %v1640 = vcombine.low %v1614, %v1615
        %v1642 = vunpack.c.l.s4 1983009808
        %v1643 = vunpack.c.0.s8 %v1642
        %v1644 = vlaneseq
        %v1645 = vshrl.u32 %v1644, 7
        %v1646 = vsub.s32 %v1643, %v1645
        %v1647 = vrot.slane %v1640, %v1646
        %v1648 = vcombine.low %v1623, %v1631
        %v1649 = vcombine.high %v1623, %v1631
        %v1651 = vunpack.c.l.s4 1934713408
        %v1652 = vunpack.c.0.s8 %v1651
        %v1653 = vlaneseq
        %v1654 = vshrl.u32 %v1653, 7
        %v1655 = vsub.s32 %v1652, %v1654
        %v1656 = vrot.slane %v1648, %v1655
        %v1658 = vunpack.c.l.s4 1934713408
        %v1659 = vunpack.c.0.s8 %v1658
        %v1660 = vlaneseq
        %v1661 = vshrl.u32 %v1660, 7
        %v1662 = vsub.s32 %v1659, %v1661
        %v1663 = vrot.slane %v1649, %v1662
        %v1664 = vcombine.low %v1639, %v1647
        %v1665 = vcombine.high %v1639, %v1647
        %v1667 = vunpack.c.l.s4 1934713408
        %v1668 = vunpack.c.0.s8 %v1667
        %v1669 = vlaneseq
        %v1670 = vshrl.u32 %v1669, 7
        %v1671 = vsub.s32 %v1668, %v1670
        %v1672 = vrot.slane %v1664, %v1671
        %v1674 = vunpack.c.l.s4 1934713408
        %v1675 = vunpack.c.0.s8 %v1674
        %v1676 = vlaneseq
        %v1677 = vshrl.u32 %v1676, 7
        %v1678 = vsub.s32 %v1675, %v1677
        %v1679 = vrot.slane %v1665, %v1678
        %v1680 = vcombine.low %v1656, %v1672
        %v1681 = vcombine.high %v1656, %v1672
        %v1682 = vcombine.low %v1663, %v1679
        %v1683 = vcombine.high %v1663, %v1679
        %1685 = vrot.lane.b32.xlu0 %v1681, 8
        %v1686 = vpop.permute.xlu0 %1685
        %1689 = vrot.lane.b32.xlu0 %v1682, 16
        %v1690 = vpop.permute.xlu0 %1689
        %1693 = vrot.lane.b32.xlu0 %v1683, 24
        %v1694 = vpop.permute.xlu0 %1693
        %v1696 = vsel %vm1130, %v1680, %v1686
        %vm1697 = vcmask 130048
        %v1698 = vsel %vm1697, %v1696, %v1690
        %vm1699 = vcmask 195584
        %v1700 = vsel %vm1699, %v1698, %v1694
        %v1701 = vpack.c.bf16 %v1700, %v1700
        %v1702 = vld [vmem:[#allocation11] sm:$0xf]
        %v1703 = vld [vmem:[#allocation11 + $0x4] sm:$0xf]
        %v1704 = vld [vmem:[#allocation11 + $0x8] sm:$0xf]
        %v1705 = vld [vmem:[#allocation11 + $0xc] sm:$0xf]
        %v1710 = vunpack.c.l.b16 %v1702
        %v1711 = vunpack.c.l.b16 %v1703
        %v1712 = vunpack.c.l.b16 %v1704
        %v1713 = vunpack.c.l.b16 %v1705
        %v1714 = vpack.c.b16 %v1711, %v1710
        %v1715 = vpack.c.b16 %v1713, %v1712
        %v1719 = vsel %vm581, %v1701, 0
        %1721 = vmatprep.subr.bf16.mxu0 0
        %1722 = vmatpush1.bf16.msra.mxu0 %v1714
        %1723 = vmatprep.subr.bf16.mxu0 0
        %1724 = vmatpush1.bf16.msra.mxu0 %v1715
        %1725 = vmatprep.subr.bf16.mxu0 0
        %1726 = vmatpush1.bf16.msra.mxu0 0
        %1727 = vmatprep.subr.bf16.mxu0 0
        %1728 = vmatpush1.bf16.msra.mxu0 0
        %1729 = vmatprep.subr.bf16.mxu0 0
        %1730 = vmatpush1.bf16.msra.mxu0 0
        %1731 = vmatprep.subr.bf16.mxu0 0
        %1732 = vmatpush1.bf16.msra.mxu0 0
        %1733 = vmatprep.subr.bf16.mxu0 0
        %1734 = vmatpush1.bf16.msra.mxu0 0
        %1735 = vmatprep.subr.bf16.mxu0 0
        %1736 = vmatpush1.bf16.msra.mxu0 0
        %1737 = vmatprep.subr.bf16.mxu0 0
        %1738 = vmatpush1.bf16.msra.mxu0 0
        %1739 = vmatprep.subr.bf16.mxu0 0
        %1740 = vmatpush1.bf16.msra.mxu0 0
        %1741 = vmatprep.subr.bf16.mxu0 0
        %1742 = vmatpush1.bf16.msra.mxu0 0
        %1743 = vmatprep.subr.bf16.mxu0 0
        %1744 = vmatpush1.bf16.msra.mxu0 0
        %1745 = vmatprep.subr.bf16.mxu0 0
        %1746 = vmatpush1.bf16.msra.mxu0 0
        %1747 = vmatprep.subr.bf16.mxu0 0
        %1748 = vmatpush1.bf16.msra.mxu0 0
        %1749 = vmatprep.subr.bf16.mxu0 0
        %1750 = vmatpush1.bf16.msra.mxu0 0
        %1751 = vmatprep.subr.bf16.mxu0 0
        %1752 = vmatpush1.bf16.msra.mxu0 0
        %1753 = vmatprep.mubr.bf16.mxu0 0
        %1754 = vmatmul.mubr.bf16.gmra.mrb[0].mxu0 %v1719
        %v1755 = vpop.f32.mrb[0].mxu0
        %v1756 = vadd.f32 0.0, %v1755
        %v1757 = vpop.f32.mrb[0].mxu0
        %v1758 = vpop.f32.mrb[0].mxu0
        %v1759 = vpop.f32.mrb[0].mxu0
        %1760 = vdwg.mxu0
        %v1761 = vld [vmem:[#allocation13] sm:$0xf]
        %v1762 = vld [vmem:[#allocation13 + $0x4] sm:$0xf]
        %v1763 = vld [vmem:[#allocation13 + $0x8] sm:$0xf]
        %v1764 = vld [vmem:[#allocation13 + $0xc] sm:$0xf]
        %v1765 = vld [vmem:[#allocation14] sm:$0x1]
        %v1767 = vlaneseq
        %v1768 = vshrl.u32 %v1767, 7
        %v1769 = vsub.s32 0, %v1768
        %v1770 = vrot.slane %v1765, %v1769
        %v1776 = vunpack.c.l.b16 %v1761
        %v1777 = vunpack.c.l.b16 %v1762
        %v1778 = vunpack.c.l.b16 %v1763
        %v1779 = vunpack.c.l.b16 %v1764
        %v1780 = vpack.c.b16 %v1777, %v1776
        %v1781 = vpack.c.b16 %v1779, %v1778
        %1784 = vmatprep.subr.bf16.mxu0 0
        %1785 = vmatpush1.bf16.msra.mxu0 %v1780
        %1786 = vmatprep.subr.bf16.mxu0 0
        %1787 = vmatpush1.bf16.msra.mxu0 %v1781
        %1788 = vmatprep.subr.bf16.mxu0 0
        %1789 = vmatpush1.bf16.msra.mxu0 0
        %1790 = vmatprep.subr.bf16.mxu0 0
        %1791 = vmatpush1.bf16.msra.mxu0 0
        %1792 = vmatprep.subr.bf16.mxu0 0
        %1793 = vmatpush1.bf16.msra.mxu0 0
        %1794 = vmatprep.subr.bf16.mxu0 0
        %1795 = vmatpush1.bf16.msra.mxu0 0
        %1796 = vmatprep.subr.bf16.mxu0 0
        %1797 = vmatpush1.bf16.msra.mxu0 0
        %1798 = vmatprep.subr.bf16.mxu0 0
        %1799 = vmatpush1.bf16.msra.mxu0 0
        %1800 = vmatprep.subr.bf16.mxu0 0
        %1801 = vmatpush1.bf16.msra.mxu0 0
        %1802 = vmatprep.subr.bf16.mxu0 0
        %1803 = vmatpush1.bf16.msra.mxu0 0
        %1804 = vmatprep.subr.bf16.mxu0 0
        %1805 = vmatpush1.bf16.msra.mxu0 0
        %1806 = vmatprep.subr.bf16.mxu0 0
        %1807 = vmatpush1.bf16.msra.mxu0 0
        %1808 = vmatprep.subr.bf16.mxu0 0
        %1809 = vmatpush1.bf16.msra.mxu0 0
        %1810 = vmatprep.subr.bf16.mxu0 0
        %1811 = vmatpush1.bf16.msra.mxu0 0
        %1812 = vmatprep.subr.bf16.mxu0 0
        %1813 = vmatpush1.bf16.msra.mxu0 0
        %1814 = vmatprep.subr.bf16.mxu0 0
        %1815 = vmatpush1.bf16.msra.mxu0 0
        %1816 = vmatprep.mubr.bf16.mxu0 0
        %1817 = vmatmul.mubr.bf16.gmra.mrb[0].mxu0 %v628
        %v1818 = vpop.f32.mrb[0].mxu0
        %v1819 = vadd.f32 %v1770, %v1818
        %v1820 = vpop.f32.mrb[0].mxu0
        %v1821 = vpop.f32.mrb[0].mxu0
        %v1822 = vpop.f32.mrb[0].mxu0
        %1823 = vdwg.mxu0
        %v1824 = vmax.f32 %v1819, 0.0
        %v1825 = vpack.c.bf16 %v1824, %v1824
        %v1826 = vld [vmem:[#allocation16] sm:$0xf]
        %v1827 = vld [vmem:[#allocation16 + $0x4] sm:$0xf]
        %v1828 = vld [vmem:[#allocation16 + $0x8] sm:$0xf]
        %v1829 = vld [vmem:[#allocation16 + $0xc] sm:$0xf]
        %v1830 = vld [vmem:[#allocation16 + $0x10] sm:$0xf]
        %v1831 = vld [vmem:[#allocation16 + $0x14] sm:$0xf]
        %v1832 = vld [vmem:[#allocation16 + $0x18] sm:$0xf]
        %v1833 = vld [vmem:[#allocation16 + $0x1c] sm:$0xf]
        %v1834 = vld [vmem:[#allocation17] sm:$0x1]
        %v1836 = vlaneseq
        %v1837 = vshrl.u32 %v1836, 7
        %v1838 = vsub.s32 0, %v1837
        %v1839 = vrot.slane %v1834, %v1838
        %v1849 = vunpack.c.l.b16 %v1826
        %v1850 = vunpack.c.l.b16 %v1827
        %v1851 = vunpack.c.l.b16 %v1828
        %v1852 = vunpack.c.l.b16 %v1829
        %v1853 = vunpack.c.l.b16 %v1830
        %v1854 = vunpack.c.l.b16 %v1831
        %v1855 = vunpack.c.l.b16 %v1832
        %v1856 = vunpack.c.l.b16 %v1833
        %v1857 = vpack.c.b16 %v1850, %v1849
        %v1858 = vpack.c.b16 %v1852, %v1851
        %v1859 = vpack.c.b16 %v1854, %v1853
        %v1860 = vpack.c.b16 %v1856, %v1855
        %vm1865 = vcmask 523264
        %v1867 = vsel %vm1865, %v1825, 0
        %1869 = vmatprep.subr.bf16.mxu0 0
        %1870 = vmatpush1.bf16.msra.mxu0 %v1857
        %1871 = vmatprep.subr.bf16.mxu0 0
        %1872 = vmatpush1.bf16.msra.mxu0 %v1858
        %1873 = vmatprep.subr.bf16.mxu0 0
        %1874 = vmatpush1.bf16.msra.mxu0 %v1859
        %1875 = vmatprep.subr.bf16.mxu0 0
        %1876 = vmatpush1.bf16.msra.mxu0 %v1860
        %1877 = vmatprep.subr.bf16.mxu0 0
        %1878 = vmatpush1.bf16.msra.mxu0 0
        %1879 = vmatprep.subr.bf16.mxu0 0
        %1880 = vmatpush1.bf16.msra.mxu0 0
        %1881 = vmatprep.subr.bf16.mxu0 0
        %1882 = vmatpush1.bf16.msra.mxu0 0
        %1883 = vmatprep.subr.bf16.mxu0 0
        %1884 = vmatpush1.bf16.msra.mxu0 0
        %1885 = vmatprep.subr.bf16.mxu0 0
        %1886 = vmatpush1.bf16.msra.mxu0 0
        %1887 = vmatprep.subr.bf16.mxu0 0
        %1888 = vmatpush1.bf16.msra.mxu0 0
        %1889 = vmatprep.subr.bf16.mxu0 0
        %1890 = vmatpush1.bf16.msra.mxu0 0
        %1891 = vmatprep.subr.bf16.mxu0 0
        %1892 = vmatpush1.bf16.msra.mxu0 0
        %1893 = vmatprep.subr.bf16.mxu0 0
        %1894 = vmatpush1.bf16.msra.mxu0 0
        %1895 = vmatprep.subr.bf16.mxu0 0
        %1896 = vmatpush1.bf16.msra.mxu0 0
        %1897 = vmatprep.subr.bf16.mxu0 0
        %1898 = vmatpush1.bf16.msra.mxu0 0
        %1899 = vmatprep.subr.bf16.mxu0 0
        %1900 = vmatpush1.bf16.msra.mxu0 0
        %1901 = vmatprep.mubr.bf16.mxu0 0
        %1902 = vmatmul.mubr.bf16.gmra.mrb[0].mxu0 %v1867
        %v1903 = vpop.f32.mrb[0].mxu0
        %v1904 = vadd.f32 %v1839, %v1903
        %v1905 = vpop.f32.mrb[0].mxu0
        %v1906 = vpop.f32.mrb[0].mxu0
        %v1907 = vpop.f32.mrb[0].mxu0
        %1908 = vdwg.mxu0
        %v1909 = vld [vmem:[#allocation19] sm:$0x1]
        %v1910 = vld [vmem:[#allocation20] sm:$0x1]
        %v1911 = vsel %vm581, %v1904, 0.0
        %1912 = vadd.xlane.f32.xlu0 %v1911
        %v1913 = vpop.xlane.xlu0 %1912
        %v1914 = vmul.f32 %v1913, %v585
        %v1915 = vsub.f32 %v1904, %v1914
        %v1916 = vmul.f32 %v1915, %v1915
        %v1917 = vsel %vm581, %v1916, 0.0
        %1918 = vadd.xlane.f32.xlu0 %v1917
        %v1919 = vpop.xlane.xlu0 %1918
        %v1920 = vmul.f32 %v1919, %v585
        %v1921 = vadd.f32 %v1920, 1e-06
        %v1922 = vrsqrt.pop %v1921
        %v1923 = vmul.f32 %v1915, %v1922
        %v1925 = vlaneseq
        %v1926 = vshrl.u32 %v1925, 7
        %v1927 = vsub.s32 0, %v1926
        %v1928 = vrot.slane %v1909, %v1927
        %v1930 = vmul.f32 %v1923, %v1928
        %v1932 = vlaneseq
        %v1933 = vshrl.u32 %v1932, 7
        %v1934 = vsub.s32 0, %v1933
        %v1935 = vrot.slane %v1910, %v1934
        %v1937 = vadd.f32 %v1930, %v1935
        %v1938 = vadd.f32 %v578, %v1756
        %v1939 = vadd.f32 %v1938, %v1937
        %1940 = vst.msk [vmem:[%s574] sm:$0xff] %vm581, %v1939
        %s1941 = sand.u32 %s300, 1
        %s1942 = scalar_lea.sflag [#allocation4], %s1941
        %s1943 = sand.u32 %s300, 1
        %s1944 = smul.addr %s1943, 8
        %s1945 = scalar_lea.vmem [#allocation22], %s1944
        // Predicated region
        $region117: #{gpt_decoder_forward.3} parent=67 // pred_check
          %p1946 = pneg %p310
        $region118: #{gpt_decoder_forward.3} parent=67 // pred_check_branch
          %1948 = sbr.rel (%p1946) target = $region120
        $region119: #{gpt_decoder_forward.3} parent=67 // pred_region
          %s1950 = ssub.s32 128, 128
          %1951 = vsyncadd %s1942, %s1950
          %s1952 = smul.addr %s35, 128
          %s1953 = scalar_lea.hbm %s12, %s1952
          %s1955 = sshll.u32 %s1945, 4
          %s1956 = int_to_ptr.vmem [resolvable:$true] %s1955
          %1958 = dma.vmem_to_hbm [thread:$0]  %s1956, 128, %s1953, %s1942
        $region120: #{gpt_decoder_forward.3} parent=67 // pred_fallthru
          _
      $region68: #{gpt_decoder_forward.3} parent=5 // pred_fallthru
        _
      %p1959 = scmp.le.s32.totalorder 2, %s30
      // Predicated region
      $region121: #{gpt_decoder_forward.3} parent=5 // pred_check
        %p1960 = pneg %p1959
      $region122: #{gpt_decoder_forward.3} parent=5 // pred_check_branch
        %1962 = sbr.rel (%p1960) target = $region124
      $region123: #{gpt_decoder_forward.3} parent=5 // pred_region
        %s1963 = ssub.s32 %s30, 2
        // Predicated region
        $region125: #{gpt_decoder_forward.3} parent=123 // pred_check
          %p1964 = pneg %p316
        $region126: #{gpt_decoder_forward.3} parent=123 // pred_check_branch
          %1966 = sbr.rel (%p1964) target = $region128
        $region127: #{gpt_decoder_forward.3} parent=123 // pred_region
          %s1967 = sand.u32 %s301, 1
          %s1968 = scalar_lea.sflag [#allocation4], %s1967
          %s1969 = sand.u32 %s301, 1
          %s1970 = smul.addr %s1969, 8
          %s1971 = scalar_lea.vmem [#allocation22], %s1970
          %1972 = dma.done %s1968, 128
        $region128: #{gpt_decoder_forward.3} parent=123 // pred_fallthru
          _
      $region124: #{gpt_decoder_forward.3} parent=5 // pred_fallthru
        _
    $region6: #{gpt_decoder_forward.3} parent=1 // loop_footer
      %s34 = sadd.s32 1, %s30
    $region7: #{gpt_decoder_forward.3} parent=1 // loop_footer_branch
      %29 = sbr.rel target = $region3
    $region8: #{gpt_decoder_forward.3} parent=1 // loop_exit
      _
    %1973 = vsyncpa [#allocation3], 1
    %s1974 = scalar_lea.sflag [#allocation3], 1
    %1975 = vsyncpa %s1974, 1
    %1976 = vsyncpa [#allocation6], 1
    %1977 = vsyncpa [#allocation9], 1
    %1978 = vsyncpa [#allocation12], 1
    %1979 = vsyncpa [#allocation15], 1
    %1980 = vsyncpa [#allocation18], 1
    %1981 = vsyncpa [#allocation21], 1
    %1982 = vsyncpa [#allocation4], 1
    %s1983 = scalar_lea.sflag [#allocation4], 1
    %1984 = vsyncpa %s1983, 1

</llo_original>
